<compile_context>
chip_gen: v7x
topology: tpu7x:2x2x1
jax: 0.10.0
libtpu: 0.0.40
codegen_flags: <defaults>
</compile_context>

<pallas_src>
import functools

import jax
import jax.numpy as jnp
from jax.experimental import pallas as pl
from jax.experimental.pallas import tpu as pltpu


# ---------------------------------------------------------------------------
# Fused multi-layer LSTM encoder kernel (single invocation, no grid).
# ---------------------------------------------------------------------------
def _encoder_kernel(n_layers, seq_len, batch_pad, hid_dim, *refs):
    """refs = x_flat, (w_ih_t, w_hh_t, bias) * n_layers, hidden, cell,
              seq_scratch, gx_scratch.

    x_flat:      (S*B_pad, D_in0) bf16  time-major flattened (batch-padded) input
    w_ih_t:      (D_in_l, 4H)     bf16  transposed PyTorch weight_ih for layer l
    w_hh_t:      (H, 4H)          bf16  transposed PyTorch weight_hh for layer l
    bias:        (1, 4H)          f32   bias_ih + bias_hh for layer l
    hidden:      (n_layers, B_pad, H) f32 output
    cell:        (n_layers, B_pad, H) f32 output
    seq_scratch: (S*B_pad, H)     f32   VMEM scratch for the inter-layer sequence
    gx_scratch:  (S*B_pad, 4H)    f32   VMEM scratch for the hoisted input projection
    """
    S, B, H = seq_len, batch_pad, hid_dim
    n_in = 1 + 3 * n_layers
    x_ref = refs[0]
    w_refs = refs[1:n_in]
    hidden_ref = refs[n_in]
    cell_ref = refs[n_in + 1]
    seq_scratch = refs[n_in + 2]
    gx_scratch = refs[n_in + 3]

    for layer in range(n_layers):
        w_ih_t = w_refs[3 * layer][...]                      # (D_in, 4H) bf16
        w_hh_t = w_refs[3 * layer + 1][...]                  # (H, 4H)   bf16
        bias = w_refs[3 * layer + 2][...]                    # (1, 4H)   f32
        last_layer = layer == n_layers - 1

        # Hoisted, time-independent input projection + bias for all S*B tokens,
        # staged into VMEM scratch (off the serial critical path). bf16 MXU
        # inputs, f32 accumulation.
        if layer == 0:
            layer_in = x_ref[...]                            # already bf16
        else:
            layer_in = seq_scratch[...].astype(jnp.bfloat16)
        gx_scratch[...] = (
            jnp.dot(layer_in, w_ih_t, preferred_element_type=jnp.float32) + bias
        )

        def step(t, carry, _last=last_layer, _w_hh_t=w_hh_t):
            h, c = carry
            row = pl.multiple_of(t * B, B)                   # aligned sublane tile
            gates = gx_scratch[pl.ds(row, B), :] + jnp.dot(
                h.astype(jnp.bfloat16), _w_hh_t,
                preferred_element_type=jnp.float32,
            )                                                # (B, 4H) f32
            # PyTorch gate order: i, f, g, o.
            # One wide sigmoid over the whole gate block + one tanh on the g slice
            # (fewer, wider EUP pushes on the serial chain).
            z = jax.nn.sigmoid(gates)
            g_g = jnp.tanh(gates[:, 2 * H:3 * H])
            i_g = z[:, 0 * H:1 * H]
            f_g = z[:, 1 * H:2 * H]
            o_g = z[:, 3 * H:4 * H]
            c = f_g * c + i_g * g_g
            h = o_g * jnp.tanh(c)
            if not _last:
                # Inter-layer sequence stays resident in VMEM (aligned 8-row store).
                seq_scratch[pl.ds(row, B), :] = h
            return (h, c)

        h0 = jnp.zeros((B, H), jnp.float32)
        c0 = jnp.zeros((B, H), jnp.float32)
        # S is small & static here -> fully unrolled; for large S use unroll=False.
        h, c = jax.lax.fori_loop(0, S, step, (h0, c0), unroll=True)

        hidden_ref[layer] = h
        cell_ref[layer] = c


def encoder_forward(src, params):
    """Fused Pallas encoder. params: list of (w_ih, w_hh, b_ih, b_hh) per layer
    in PyTorch nn.LSTM shapes. Returns (hidden, cell), each (n_layers, B, H)."""
    S, B, D_in = src.shape
    n_layers = len(params)
    H = params[0][1].shape[1]                                # w_hh: (4H, H)

    # Pad the batch up to a multiple of 8 so every per-step tile is (8k, lanes)
    # sublane-aligned.  Padded rows compute independent garbage and are sliced off.
    B_pad = ((B + 7) // 8) * 8
    if B_pad != B:
        src_p = jnp.zeros((S, B_pad, D_in), src.dtype).at[:, :B, :].set(src)
    else:
        src_p = src

    flat_inputs = [src_p.reshape(S * B_pad, D_in).astype(jnp.bfloat16)]
    for (w_ih, w_hh, b_ih, b_hh) in params:
        flat_inputs.append(jnp.transpose(w_ih).astype(jnp.bfloat16))   # (D_in, 4H)
        flat_inputs.append(jnp.transpose(w_hh).astype(jnp.bfloat16))   # (H, 4H)
        flat_inputs.append((b_ih + b_hh).reshape(1, -1).astype(jnp.float32))

    vmem = pl.BlockSpec(memory_space=pltpu.MemorySpace.VMEM)
    kernel = functools.partial(_encoder_kernel, n_layers, S, B_pad, H)

    hidden, cell = pl.pallas_call(
        kernel,
        out_shape=(
            jax.ShapeDtypeStruct((n_layers, B_pad, H), jnp.float32),
            jax.ShapeDtypeStruct((n_layers, B_pad, H), jnp.float32),
        ),
        in_specs=[vmem] * len(flat_inputs),
        out_specs=(
            pl.BlockSpec(memory_space=pltpu.MemorySpace.VMEM),
            pl.BlockSpec(memory_space=pltpu.MemorySpace.VMEM),
        ),
        scratch_shapes=[
            pltpu.VMEM((S * B_pad, H), jnp.float32),       # inter-layer sequence
            pltpu.VMEM((S * B_pad, 4 * H), jnp.float32),   # hoisted projection gx
        ],
        compiler_params=pltpu.CompilerParams(
            vmem_limit_bytes=64 * 1024 * 1024,             # safe on v5e/v6e/v7x
        ),
    )(*flat_inputs)

    return hidden[:, :B, :], cell[:, :B, :]


# ---------------------------------------------------------------------------
# Pure-JAX reference (f32, PyTorch-equivalent math) for correctness check.
# ---------------------------------------------------------------------------
def encoder_reference(src, params):
    x = src
    hiddens, cells = [], []
    for (w_ih, w_hh, b_ih, b_hh) in params:
        B = x.shape[1]
        H = w_hh.shape[1]
        h0 = jnp.zeros((B, H), jnp.float32)
        c0 = jnp.zeros((B, H), jnp.float32)

        def step(carry, x_t):
            h, c = carry
            gates = x_t @ w_ih.T + h @ w_hh.T + b_ih + b_hh
            i_g = jax.nn.sigmoid(gates[:, 0 * H:1 * H])
            f_g = jax.nn.sigmoid(gates[:, 1 * H:2 * H])
            g_g = jnp.tanh(gates[:, 2 * H:3 * H])
            o_g = jax.nn.sigmoid(gates[:, 3 * H:4 * H])
            c_new = f_g * c + i_g * g_g
            h_new = o_g * jnp.tanh(c_new)
            return (h_new, c_new), h_new

        (h_last, c_last), out_seq = jax.lax.scan(step, (h0, c0), x)
        hiddens.append(h_last)
        cells.append(c_last)
        x = out_seq
    return jnp.stack(hiddens, axis=0), jnp.stack(cells, axis=0)


# ---------------------------------------------------------------------------
# Deterministic parameter init (PyTorch nn.LSTM shapes).
# ---------------------------------------------------------------------------
def init_params(key, input_dim, hid_dim, n_layers):
    params = []
    bound = 1.0 / jnp.sqrt(hid_dim)
    for layer in range(n_layers):
        d_in = input_dim if layer == 0 else hid_dim
        key, k1, k2, k3, k4 = jax.random.split(key, 5)
        w_ih = jax.random.uniform(k1, (4 * hid_dim, d_in), jnp.float32, -bound, bound)
        w_hh = jax.random.uniform(k2, (4 * hid_dim, hid_dim), jnp.float32, -bound, bound)
        b_ih = jax.random.uniform(k3, (4 * hid_dim,), jnp.float32, -bound, bound)
        b_hh = jax.random.uniform(k4, (4 * hid_dim,), jnp.float32, -bound, bound)
        params.append((w_ih, w_hh, b_ih, b_hh))
    return params


if __name__ == "__main__":
    # Small shapes consistent with Encoder.forward: src is (seq_len, batch, input_dim)
    SEQ, BATCH, INPUT_DIM, HID_DIM, N_LAYERS = 8, 4, 16, 32, 2

    key = jax.random.PRNGKey(0)
    key, k_src = jax.random.split(key)
    src = jax.random.normal(k_src, (SEQ, BATCH, INPUT_DIM), jnp.float32)
    params = init_params(key, INPUT_DIM, HID_DIM, N_LAYERS)

    hidden, cell = encoder_forward(src, params)
    hidden, cell = jax.block_until_ready((hidden, cell))

    ref_hidden, ref_cell = encoder_reference(src, params)
    assert hidden.shape == (N_LAYERS, BATCH, HID_DIM)
    assert cell.shape == (N_LAYERS, BATCH, HID_DIM)
    # Kernel feeds bf16 into the MXU (f32 accumulation); reference is pure f32,
    # so compare at bf16-appropriate tolerance.
    assert jnp.allclose(hidden, ref_hidden, atol=2e-2, rtol=2e-2)
    assert jnp.allclose(cell, ref_cell, atol=2e-2, rtol=2e-2)

    print("KERNEL_OK")
</pallas_src>

<mosaic_0001>
module attributes {stable_mosaic.version = 11 : i64} {
  func.func @_encoder_kernel(%arg0: memref<64x16xbf16, #tpu.memory_space<vmem>>, %arg1: memref<16x128xbf16, #tpu.memory_space<vmem>>, %arg2: memref<32x128xbf16, #tpu.memory_space<vmem>>, %arg3: memref<1x128xf32, #tpu.memory_space<vmem>>, %arg4: memref<32x128xbf16, #tpu.memory_space<vmem>>, %arg5: memref<32x128xbf16, #tpu.memory_space<vmem>>, %arg6: memref<1x128xf32, #tpu.memory_space<vmem>>, %arg7: memref<2x8x32xf32, #tpu.memory_space<vmem>>, %arg8: memref<2x8x32xf32, #tpu.memory_space<vmem>>, %arg9: memref<64x32xf32, #tpu.memory_space<vmem>>, %arg10: memref<64x128xf32, #tpu.memory_space<vmem>>) attributes {dimension_semantics = [], scalar_prefetch = 0 : i64, scratch_operands = 2 : i64, tpu.core_type = #tpu.core_type<tc>} {
    %c0 = arith.constant 0 : index
    %c0_0 = arith.constant 0 : index
    %0 = vector.load %arg1[%c0, %c0_0] : memref<16x128xbf16, #tpu.memory_space<vmem>>, vector<16x128xbf16>
    %c0_1 = arith.constant 0 : index
    %c0_2 = arith.constant 0 : index
    %1 = vector.load %arg2[%c0_1, %c0_2] : memref<32x128xbf16, #tpu.memory_space<vmem>>, vector<32x128xbf16>
    %c0_3 = arith.constant 0 : index
    %c0_4 = arith.constant 0 : index
    %2 = vector.load %arg3[%c0_3, %c0_4] : memref<1x128xf32, #tpu.memory_space<vmem>>, vector<1x128xf32>
    %c0_5 = arith.constant 0 : index
    %c0_6 = arith.constant 0 : index
    %3 = vector.load %arg0[%c0_5, %c0_6] : memref<64x16xbf16, #tpu.memory_space<vmem>>, vector<64x16xbf16>
    %cst = arith.constant dense<0.000000e+00> : vector<64x128xf32>
    %4 = tpu.matmul %3, %0, %cst {dimension_numbers = #tpu.dot_dimension_numbers<[1], [0], [0], [1], [0, 0, 1, 1], [], []>} : vector<64x16xbf16>, vector<16x128xbf16>, vector<64x128xf32> -> vector<64x128xf32>
    %5 = vector.broadcast %2 : vector<1x128xf32> to vector<64x128xf32>
    %6 = arith.addf %4, %5 : vector<64x128xf32>
    %c0_7 = arith.constant 0 : index
    %c0_8 = arith.constant 0 : index
    %7 = vector.load %arg10[%c0_7, %c0_8] : memref<64x128xf32, #tpu.memory_space<vmem>>, vector<64x128xf32>
    tpu.vector_store %arg10[%c0_7, %c0_8], %6 {strides = array<i32>} : memref<64x128xf32, #tpu.memory_space<vmem>>, vector<64x128xf32>,
    %cst_9 = arith.constant 0.000000e+00 : f32
    %8 = vector.broadcast %cst_9 : f32 to vector<8x32xf32>
    %cst_10 = arith.constant 0.000000e+00 : f32
    %9 = vector.broadcast %cst_10 : f32 to vector<8x32xf32>
    %c0_i32 = arith.constant 0 : i32
    %c8_i32 = arith.constant 8 : i32
    %10 = arith.muli %c0_i32, %c8_i32 : i32
    %11 = tpu.assume_multiple %10, 8 : i32
    %12 = arith.index_cast %11 : i32 to index
    %c0_11 = arith.constant 0 : index
    %13 = vector.load %arg10[%12, %c0_11] : memref<64x128xf32, #tpu.memory_space<vmem>>, vector<8x128xf32>
    %14 = arith.truncf %8 : vector<8x32xf32> to vector<8x32xbf16>
    %cst_12 = arith.constant dense<0.000000e+00> : vector<8x128xf32>
    %15 = tpu.matmul %14, %1, %cst_12 {dimension_numbers = #tpu.dot_dimension_numbers<[1], [0], [0], [1], [0, 0, 1, 1], [], []>} : vector<8x32xbf16>, vector<32x128xbf16>, vector<8x128xf32> -> vector<8x128xf32>
    %16 = arith.addf %13, %15 : vector<8x128xf32>
    %17 = arith.negf %16 : vector<8x128xf32>
    %18 = math.exp %17 : vector<8x128xf32>
    %cst_13 = arith.constant 1.000000e+00 : f32
    %19 = vector.broadcast %cst_13 : f32 to vector<8x128xf32>
    %20 = arith.addf %19, %18 : vector<8x128xf32>
    %21 = arith.divf %19, %20 : vector<8x128xf32>
    %22 = vector.extract_strided_slice %16 {offsets = [0, 64], sizes = [8, 32], strides = [1, 1]} : vector<8x128xf32> to vector<8x32xf32>
    %23 = math.tanh %22 : vector<8x32xf32>
    %24 = vector.extract_strided_slice %21 {offsets = [0, 0], sizes = [8, 32], strides = [1, 1]} : vector<8x128xf32> to vector<8x32xf32>
    %25 = vector.extract_strided_slice %21 {offsets = [0, 32], sizes = [8, 32], strides = [1, 1]} : vector<8x128xf32> to vector<8x32xf32>
    %26 = vector.extract_strided_slice %21 {offsets = [0, 96], sizes = [8, 32], strides = [1, 1]} : vector<8x128xf32> to vector<8x32xf32>
    %27 = arith.mulf %25, %9 : vector<8x32xf32>
    %28 = arith.mulf %24, %23 : vector<8x32xf32>
    %29 = arith.addf %27, %28 : vector<8x32xf32>
    %30 = math.tanh %29 : vector<8x32xf32>
    %31 = arith.mulf %26, %30 : vector<8x32xf32>
    %32 = arith.index_cast %11 : i32 to index
    %c0_14 = arith.constant 0 : index
    %33 = vector.load %arg9[%32, %c0_14] : memref<64x32xf32, #tpu.memory_space<vmem>>, vector<8x32xf32>
    tpu.vector_store %arg9[%32, %c0_14], %31 {strides = array<i32>} : memref<64x32xf32, #tpu.memory_space<vmem>>, vector<8x32xf32>,
    %c1_i32 = arith.constant 1 : i32
    %c8_i32_15 = arith.constant 8 : i32
    %34 = arith.muli %c1_i32, %c8_i32_15 : i32
    %35 = tpu.assume_multiple %34, 8 : i32
    %36 = arith.index_cast %35 : i32 to index
    %c0_16 = arith.constant 0 : index
    %37 = vector.load %arg10[%36, %c0_16] : memref<64x128xf32, #tpu.memory_space<vmem>>, vector<8x128xf32>
    %38 = arith.truncf %31 : vector<8x32xf32> to vector<8x32xbf16>
    %cst_17 = arith.constant dense<0.000000e+00> : vector<8x128xf32>
    %39 = tpu.matmul %38, %1, %cst_17 {dimension_numbers = #tpu.dot_dimension_numbers<[1], [0], [0], [1], [0, 0, 1, 1], [], []>} : vector<8x32xbf16>, vector<32x128xbf16>, vector<8x128xf32> -> vector<8x128xf32>
    %40 = arith.addf %37, %39 : vector<8x128xf32>
    %41 = arith.negf %40 : vector<8x128xf32>
    %42 = math.exp %41 : vector<8x128xf32>
    %cst_18 = arith.constant 1.000000e+00 : f32
    %43 = vector.broadcast %cst_18 : f32 to vector<8x128xf32>
    %44 = arith.addf %43, %42 : vector<8x128xf32>
    %45 = arith.divf %43, %44 : vector<8x128xf32>
    %46 = vector.extract_strided_slice %40 {offsets = [0, 64], sizes = [8, 32], strides = [1, 1]} : vector<8x128xf32> to vector<8x32xf32>
    %47 = math.tanh %46 : vector<8x32xf32>
    %48 = vector.extract_strided_slice %45 {offsets = [0, 0], sizes = [8, 32], strides = [1, 1]} : vector<8x128xf32> to vector<8x32xf32>
    %49 = vector.extract_strided_slice %45 {offsets = [0, 32], sizes = [8, 32], strides = [1, 1]} : vector<8x128xf32> to vector<8x32xf32>
    %50 = vector.extract_strided_slice %45 {offsets = [0, 96], sizes = [8, 32], strides = [1, 1]} : vector<8x128xf32> to vector<8x32xf32>
    %51 = arith.mulf %49, %29 : vector<8x32xf32>
    %52 = arith.mulf %48, %47 : vector<8x32xf32>
    %53 = arith.addf %51, %52 : vector<8x32xf32>
    %54 = math.tanh %53 : vector<8x32xf32>
    %55 = arith.mulf %50, %54 : vector<8x32xf32>
    %56 = arith.index_cast %35 : i32 to index
    %c0_19 = arith.constant 0 : index
    %57 = vector.load %arg9[%56, %c0_19] : memref<64x32xf32, #tpu.memory_space<vmem>>, vector<8x32xf32>
    tpu.vector_store %arg9[%56, %c0_19], %55 {strides = array<i32>} : memref<64x32xf32, #tpu.memory_space<vmem>>, vector<8x32xf32>,
    %c2_i32 = arith.constant 2 : i32
    %c8_i32_20 = arith.constant 8 : i32
    %58 = arith.muli %c2_i32, %c8_i32_20 : i32
    %59 = tpu.assume_multiple %58, 8 : i32
    %60 = arith.index_cast %59 : i32 to index
    %c0_21 = arith.constant 0 : index
    %61 = vector.load %arg10[%60, %c0_21] : memref<64x128xf32, #tpu.memory_space<vmem>>, vector<8x128xf32>
    %62 = arith.truncf %55 : vector<8x32xf32> to vector<8x32xbf16>
    %cst_22 = arith.constant dense<0.000000e+00> : vector<8x128xf32>
    %63 = tpu.matmul %62, %1, %cst_22 {dimension_numbers = #tpu.dot_dimension_numbers<[1], [0], [0], [1], [0, 0, 1, 1], [], []>} : vector<8x32xbf16>, vector<32x128xbf16>, vector<8x128xf32> -> vector<8x128xf32>
    %64 = arith.addf %61, %63 : vector<8x128xf32>
    %65 = arith.negf %64 : vector<8x128xf32>
    %66 = math.exp %65 : vector<8x128xf32>
    %cst_23 = arith.constant 1.000000e+00 : f32
    %67 = vector.broadcast %cst_23 : f32 to vector<8x128xf32>
    %68 = arith.addf %67, %66 : vector<8x128xf32>
    %69 = arith.divf %67, %68 : vector<8x128xf32>
    %70 = vector.extract_strided_slice %64 {offsets = [0, 64], sizes = [8, 32], strides = [1, 1]} : vector<8x128xf32> to vector<8x32xf32>
    %71 = math.tanh %70 : vector<8x32xf32>
    %72 = vector.extract_strided_slice %69 {offsets = [0, 0], sizes = [8, 32], strides = [1, 1]} : vector<8x128xf32> to vector<8x32xf32>
    %73 = vector.extract_strided_slice %69 {offsets = [0, 32], sizes = [8, 32], strides = [1, 1]} : vector<8x128xf32> to vector<8x32xf32>
    %74 = vector.extract_strided_slice %69 {offsets = [0, 96], sizes = [8, 32], strides = [1, 1]} : vector<8x128xf32> to vector<8x32xf32>
    %75 = arith.mulf %73, %53 : vector<8x32xf32>
    %76 = arith.mulf %72, %71 : vector<8x32xf32>
    %77 = arith.addf %75, %76 : vector<8x32xf32>
    %78 = math.tanh %77 : vector<8x32xf32>
    %79 = arith.mulf %74, %78 : vector<8x32xf32>
    %80 = arith.index_cast %59 : i32 to index
    %c0_24 = arith.constant 0 : index
    %81 = vector.load %arg9[%80, %c0_24] : memref<64x32xf32, #tpu.memory_space<vmem>>, vector<8x32xf32>
    tpu.vector_store %arg9[%80, %c0_24], %79 {strides = array<i32>} : memref<64x32xf32, #tpu.memory_space<vmem>>, vector<8x32xf32>,
    %c3_i32 = arith.constant 3 : i32
    %c8_i32_25 = arith.constant 8 : i32
    %82 = arith.muli %c3_i32, %c8_i32_25 : i32
    %83 = tpu.assume_multiple %82, 8 : i32
    %84 = arith.index_cast %83 : i32 to index
    %c0_26 = arith.constant 0 : index
    %85 = vector.load %arg10[%84, %c0_26] : memref<64x128xf32, #tpu.memory_space<vmem>>, vector<8x128xf32>
    %86 = arith.truncf %79 : vector<8x32xf32> to vector<8x32xbf16>
    %cst_27 = arith.constant dense<0.000000e+00> : vector<8x128xf32>
    %87 = tpu.matmul %86, %1, %cst_27 {dimension_numbers = #tpu.dot_dimension_numbers<[1], [0], [0], [1], [0, 0, 1, 1], [], []>} : vector<8x32xbf16>, vector<32x128xbf16>, vector<8x128xf32> -> vector<8x128xf32>
    %88 = arith.addf %85, %87 : vector<8x128xf32>
    %89 = arith.negf %88 : vector<8x128xf32>
    %90 = math.exp %89 : vector<8x128xf32>
    %cst_28 = arith.constant 1.000000e+00 : f32
    %91 = vector.broadcast %cst_28 : f32 to vector<8x128xf32>
    %92 = arith.addf %91, %90 : vector<8x128xf32>
    %93 = arith.divf %91, %92 : vector<8x128xf32>
    %94 = vector.extract_strided_slice %88 {offsets = [0, 64], sizes = [8, 32], strides = [1, 1]} : vector<8x128xf32> to vector<8x32xf32>
    %95 = math.tanh %94 : vector<8x32xf32>
    %96 = vector.extract_strided_slice %93 {offsets = [0, 0], sizes = [8, 32], strides = [1, 1]} : vector<8x128xf32> to vector<8x32xf32>
    %97 = vector.extract_strided_slice %93 {offsets = [0, 32], sizes = [8, 32], strides = [1, 1]} : vector<8x128xf32> to vector<8x32xf32>
    %98 = vector.extract_strided_slice %93 {offsets = [0, 96], sizes = [8, 32], strides = [1, 1]} : vector<8x128xf32> to vector<8x32xf32>
    %99 = arith.mulf %97, %77 : vector<8x32xf32>
    %100 = arith.mulf %96, %95 : vector<8x32xf32>
    %101 = arith.addf %99, %100 : vector<8x32xf32>
    %102 = math.tanh %101 : vector<8x32xf32>
    %103 = arith.mulf %98, %102 : vector<8x32xf32>
    %104 = arith.index_cast %83 : i32 to index
    %c0_29 = arith.constant 0 : index
    %105 = vector.load %arg9[%104, %c0_29] : memref<64x32xf32, #tpu.memory_space<vmem>>, vector<8x32xf32>
    tpu.vector_store %arg9[%104, %c0_29], %103 {strides = array<i32>} : memref<64x32xf32, #tpu.memory_space<vmem>>, vector<8x32xf32>,
    %c4_i32 = arith.constant 4 : i32
    %c8_i32_30 = arith.constant 8 : i32
    %106 = arith.muli %c4_i32, %c8_i32_30 : i32
    %107 = tpu.assume_multiple %106, 8 : i32
    %108 = arith.index_cast %107 : i32 to index
    %c0_31 = arith.constant 0 : index
    %109 = vector.load %arg10[%108, %c0_31] : memref<64x128xf32, #tpu.memory_space<vmem>>, vector<8x128xf32>
    %110 = arith.truncf %103 : vector<8x32xf32> to vector<8x32xbf16>
    %cst_32 = arith.constant dense<0.000000e+00> : vector<8x128xf32>
    %111 = tpu.matmul %110, %1, %cst_32 {dimension_numbers = #tpu.dot_dimension_numbers<[1], [0], [0], [1], [0, 0, 1, 1], [], []>} : vector<8x32xbf16>, vector<32x128xbf16>, vector<8x128xf32> -> vector<8x128xf32>
    %112 = arith.addf %109, %111 : vector<8x128xf32>
    %113 = arith.negf %112 : vector<8x128xf32>
    %114 = math.exp %113 : vector<8x128xf32>
    %cst_33 = arith.constant 1.000000e+00 : f32
    %115 = vector.broadcast %cst_33 : f32 to vector<8x128xf32>
    %116 = arith.addf %115, %114 : vector<8x128xf32>
    %117 = arith.divf %115, %116 : vector<8x128xf32>
    %118 = vector.extract_strided_slice %112 {offsets = [0, 64], sizes = [8, 32], strides = [1, 1]} : vector<8x128xf32> to vector<8x32xf32>
    %119 = math.tanh %118 : vector<8x32xf32>
    %120 = vector.extract_strided_slice %117 {offsets = [0, 0], sizes = [8, 32], strides = [1, 1]} : vector<8x128xf32> to vector<8x32xf32>
    %121 = vector.extract_strided_slice %117 {offsets = [0, 32], sizes = [8, 32], strides = [1, 1]} : vector<8x128xf32> to vector<8x32xf32>
    %122 = vector.extract_strided_slice %117 {offsets = [0, 96], sizes = [8, 32], strides = [1, 1]} : vector<8x128xf32> to vector<8x32xf32>
    %123 = arith.mulf %121, %101 : vector<8x32xf32>
    %124 = arith.mulf %120, %119 : vector<8x32xf32>
    %125 = arith.addf %123, %124 : vector<8x32xf32>
    %126 = math.tanh %125 : vector<8x32xf32>
    %127 = arith.mulf %122, %126 : vector<8x32xf32>
    %128 = arith.index_cast %107 : i32 to index
    %c0_34 = arith.constant 0 : index
    %129 = vector.load %arg9[%128, %c0_34] : memref<64x32xf32, #tpu.memory_space<vmem>>, vector<8x32xf32>
    tpu.vector_store %arg9[%128, %c0_34], %127 {strides = array<i32>} : memref<64x32xf32, #tpu.memory_space<vmem>>, vector<8x32xf32>,
    %c5_i32 = arith.constant 5 : i32
    %c8_i32_35 = arith.constant 8 : i32
    %130 = arith.muli %c5_i32, %c8_i32_35 : i32
    %131 = tpu.assume_multiple %130, 8 : i32
    %132 = arith.index_cast %131 : i32 to index
    %c0_36 = arith.constant 0 : index
    %133 = vector.load %arg10[%132, %c0_36] : memref<64x128xf32, #tpu.memory_space<vmem>>, vector<8x128xf32>
    %134 = arith.truncf %127 : vector<8x32xf32> to vector<8x32xbf16>
    %cst_37 = arith.constant dense<0.000000e+00> : vector<8x128xf32>
    %135 = tpu.matmul %134, %1, %cst_37 {dimension_numbers = #tpu.dot_dimension_numbers<[1], [0], [0], [1], [0, 0, 1, 1], [], []>} : vector<8x32xbf16>, vector<32x128xbf16>, vector<8x128xf32> -> vector<8x128xf32>
    %136 = arith.addf %133, %135 : vector<8x128xf32>
    %137 = arith.negf %136 : vector<8x128xf32>
    %138 = math.exp %137 : vector<8x128xf32>
    %cst_38 = arith.constant 1.000000e+00 : f32
    %139 = vector.broadcast %cst_38 : f32 to vector<8x128xf32>
    %140 = arith.addf %139, %138 : vector<8x128xf32>
    %141 = arith.divf %139, %140 : vector<8x128xf32>
    %142 = vector.extract_strided_slice %136 {offsets = [0, 64], sizes = [8, 32], strides = [1, 1]} : vector<8x128xf32> to vector<8x32xf32>
    %143 = math.tanh %142 : vector<8x32xf32>
    %144 = vector.extract_strided_slice %141 {offsets = [0, 0], sizes = [8, 32], strides = [1, 1]} : vector<8x128xf32> to vector<8x32xf32>
    %145 = vector.extract_strided_slice %141 {offsets = [0, 32], sizes = [8, 32], strides = [1, 1]} : vector<8x128xf32> to vector<8x32xf32>
    %146 = vector.extract_strided_slice %141 {offsets = [0, 96], sizes = [8, 32], strides = [1, 1]} : vector<8x128xf32> to vector<8x32xf32>
    %147 = arith.mulf %145, %125 : vector<8x32xf32>
    %148 = arith.mulf %144, %143 : vector<8x32xf32>
    %149 = arith.addf %147, %148 : vector<8x32xf32>
    %150 = math.tanh %149 : vector<8x32xf32>
    %151 = arith.mulf %146, %150 : vector<8x32xf32>
    %152 = arith.index_cast %131 : i32 to index
    %c0_39 = arith.constant 0 : index
    %153 = vector.load %arg9[%152, %c0_39] : memref<64x32xf32, #tpu.memory_space<vmem>>, vector<8x32xf32>
    tpu.vector_store %arg9[%152, %c0_39], %151 {strides = array<i32>} : memref<64x32xf32, #tpu.memory_space<vmem>>, vector<8x32xf32>,
    %c6_i32 = arith.constant 6 : i32
    %c8_i32_40 = arith.constant 8 : i32
    %154 = arith.muli %c6_i32, %c8_i32_40 : i32
    %155 = tpu.assume_multiple %154, 8 : i32
    %156 = arith.index_cast %155 : i32 to index
    %c0_41 = arith.constant 0 : index
    %157 = vector.load %arg10[%156, %c0_41] : memref<64x128xf32, #tpu.memory_space<vmem>>, vector<8x128xf32>
    %158 = arith.truncf %151 : vector<8x32xf32> to vector<8x32xbf16>
    %cst_42 = arith.constant dense<0.000000e+00> : vector<8x128xf32>
    %159 = tpu.matmul %158, %1, %cst_42 {dimension_numbers = #tpu.dot_dimension_numbers<[1], [0], [0], [1], [0, 0, 1, 1], [], []>} : vector<8x32xbf16>, vector<32x128xbf16>, vector<8x128xf32> -> vector<8x128xf32>
    %160 = arith.addf %157, %159 : vector<8x128xf32>
    %161 = arith.negf %160 : vector<8x128xf32>
    %162 = math.exp %161 : vector<8x128xf32>
    %cst_43 = arith.constant 1.000000e+00 : f32
    %163 = vector.broadcast %cst_43 : f32 to vector<8x128xf32>
    %164 = arith.addf %163, %162 : vector<8x128xf32>
    %165 = arith.divf %163, %164 : vector<8x128xf32>
    %166 = vector.extract_strided_slice %160 {offsets = [0, 64], sizes = [8, 32], strides = [1, 1]} : vector<8x128xf32> to vector<8x32xf32>
    %167 = math.tanh %166 : vector<8x32xf32>
    %168 = vector.extract_strided_slice %165 {offsets = [0, 0], sizes = [8, 32], strides = [1, 1]} : vector<8x128xf32> to vector<8x32xf32>
    %169 = vector.extract_strided_slice %165 {offsets = [0, 32], sizes = [8, 32], strides = [1, 1]} : vector<8x128xf32> to vector<8x32xf32>
    %170 = vector.extract_strided_slice %165 {offsets = [0, 96], sizes = [8, 32], strides = [1, 1]} : vector<8x128xf32> to vector<8x32xf32>
    %171 = arith.mulf %169, %149 : vector<8x32xf32>
    %172 = arith.mulf %168, %167 : vector<8x32xf32>
    %173 = arith.addf %171, %172 : vector<8x32xf32>
    %174 = math.tanh %173 : vector<8x32xf32>
    %175 = arith.mulf %170, %174 : vector<8x32xf32>
    %176 = arith.index_cast %155 : i32 to index
    %c0_44 = arith.constant 0 : index
    %177 = vector.load %arg9[%176, %c0_44] : memref<64x32xf32, #tpu.memory_space<vmem>>, vector<8x32xf32>
    tpu.vector_store %arg9[%176, %c0_44], %175 {strides = array<i32>} : memref<64x32xf32, #tpu.memory_space<vmem>>, vector<8x32xf32>,
    %c7_i32 = arith.constant 7 : i32
    %c8_i32_45 = arith.constant 8 : i32
    %178 = arith.muli %c7_i32, %c8_i32_45 : i32
    %179 = tpu.assume_multiple %178, 8 : i32
    %180 = arith.index_cast %179 : i32 to index
    %c0_46 = arith.constant 0 : index
    %181 = vector.load %arg10[%180, %c0_46] : memref<64x128xf32, #tpu.memory_space<vmem>>, vector<8x128xf32>
    %182 = arith.truncf %175 : vector<8x32xf32> to vector<8x32xbf16>
    %cst_47 = arith.constant dense<0.000000e+00> : vector<8x128xf32>
    %183 = tpu.matmul %182, %1, %cst_47 {dimension_numbers = #tpu.dot_dimension_numbers<[1], [0], [0], [1], [0, 0, 1, 1], [], []>} : vector<8x32xbf16>, vector<32x128xbf16>, vector<8x128xf32> -> vector<8x128xf32>
    %184 = arith.addf %181, %183 : vector<8x128xf32>
    %185 = arith.negf %184 : vector<8x128xf32>
    %186 = math.exp %185 : vector<8x128xf32>
    %cst_48 = arith.constant 1.000000e+00 : f32
    %187 = vector.broadcast %cst_48 : f32 to vector<8x128xf32>
    %188 = arith.addf %187, %186 : vector<8x128xf32>
    %189 = arith.divf %187, %188 : vector<8x128xf32>
    %190 = vector.extract_strided_slice %184 {offsets = [0, 64], sizes = [8, 32], strides = [1, 1]} : vector<8x128xf32> to vector<8x32xf32>
    %191 = math.tanh %190 : vector<8x32xf32>
    %192 = vector.extract_strided_slice %189 {offsets = [0, 0], sizes = [8, 32], strides = [1, 1]} : vector<8x128xf32> to vector<8x32xf32>
    %193 = vector.extract_strided_slice %189 {offsets = [0, 32], sizes = [8, 32], strides = [1, 1]} : vector<8x128xf32> to vector<8x32xf32>
    %194 = vector.extract_strided_slice %189 {offsets = [0, 96], sizes = [8, 32], strides = [1, 1]} : vector<8x128xf32> to vector<8x32xf32>
    %195 = arith.mulf %193, %173 : vector<8x32xf32>
    %196 = arith.mulf %192, %191 : vector<8x32xf32>
    %197 = arith.addf %195, %196 : vector<8x32xf32>
    %198 = math.tanh %197 : vector<8x32xf32>
    %199 = arith.mulf %194, %198 : vector<8x32xf32>
    %200 = arith.index_cast %179 : i32 to index
    %c0_49 = arith.constant 0 : index
    %201 = vector.load %arg9[%200, %c0_49] : memref<64x32xf32, #tpu.memory_space<vmem>>, vector<8x32xf32>
    tpu.vector_store %arg9[%200, %c0_49], %199 {strides = array<i32>} : memref<64x32xf32, #tpu.memory_space<vmem>>, vector<8x32xf32>,
    %c8_i32_50 = arith.constant 8 : i32
    %c0_51 = arith.constant 0 : index
    %c0_52 = arith.constant 0 : index
    %c0_53 = arith.constant 0 : index
    %202 = vector.load %arg7[%c0_51, %c0_52, %c0_53] : memref<2x8x32xf32, #tpu.memory_space<vmem>>, vector<1x8x32xf32>
    %203 = vector.shape_cast %202 : vector<1x8x32xf32> to vector<8x32xf32>
    %204 = vector.shape_cast %199 : vector<8x32xf32> to vector<1x8x32xf32>
    tpu.vector_store %arg7[%c0_51, %c0_52, %c0_53], %204 {strides = array<i32>} : memref<2x8x32xf32, #tpu.memory_space<vmem>>, vector<1x8x32xf32>,
    %c0_54 = arith.constant 0 : index
    %c0_55 = arith.constant 0 : index
    %c0_56 = arith.constant 0 : index
    %205 = vector.load %arg8[%c0_54, %c0_55, %c0_56] : memref<2x8x32xf32, #tpu.memory_space<vmem>>, vector<1x8x32xf32>
    %206 = vector.shape_cast %205 : vector<1x8x32xf32> to vector<8x32xf32>
    %207 = vector.shape_cast %197 : vector<8x32xf32> to vector<1x8x32xf32>
    tpu.vector_store %arg8[%c0_54, %c0_55, %c0_56], %207 {strides = array<i32>} : memref<2x8x32xf32, #tpu.memory_space<vmem>>, vector<1x8x32xf32>,
    %c0_57 = arith.constant 0 : index
    %c0_58 = arith.constant 0 : index
    %208 = vector.load %arg4[%c0_57, %c0_58] : memref<32x128xbf16, #tpu.memory_space<vmem>>, vector<32x128xbf16>
    %c0_59 = arith.constant 0 : index
    %c0_60 = arith.constant 0 : index
    %209 = vector.load %arg5[%c0_59, %c0_60] : memref<32x128xbf16, #tpu.memory_space<vmem>>, vector<32x128xbf16>
    %c0_61 = arith.constant 0 : index
    %c0_62 = arith.constant 0 : index
    %210 = vector.load %arg6[%c0_61, %c0_62] : memref<1x128xf32, #tpu.memory_space<vmem>>, vector<1x128xf32>
    %c0_63 = arith.constant 0 : index
    %c0_64 = arith.constant 0 : index
    %211 = vector.load %arg9[%c0_63, %c0_64] : memref<64x32xf32, #tpu.memory_space<vmem>>, vector<64x32xf32>
    %212 = arith.truncf %211 : vector<64x32xf32> to vector<64x32xbf16>
    %cst_65 = arith.constant dense<0.000000e+00> : vector<64x128xf32>
    %213 = tpu.matmul %212, %208, %cst_65 {dimension_numbers = #tpu.dot_dimension_numbers<[1], [0], [0], [1], [0, 0, 1, 1], [], []>} : vector<64x32xbf16>, vector<32x128xbf16>, vector<64x128xf32> -> vector<64x128xf32>
    %214 = vector.broadcast %210 : vector<1x128xf32> to vector<64x128xf32>
    %215 = arith.addf %213, %214 : vector<64x128xf32>
    %c0_66 = arith.constant 0 : index
    %c0_67 = arith.constant 0 : index
    %216 = vector.load %arg10[%c0_66, %c0_67] : memref<64x128xf32, #tpu.memory_space<vmem>>, vector<64x128xf32>
    tpu.vector_store %arg10[%c0_66, %c0_67], %215 {strides = array<i32>} : memref<64x128xf32, #tpu.memory_space<vmem>>, vector<64x128xf32>,
    %cst_68 = arith.constant 0.000000e+00 : f32
    %217 = vector.broadcast %cst_68 : f32 to vector<8x32xf32>
    %cst_69 = arith.constant 0.000000e+00 : f32
    %218 = vector.broadcast %cst_69 : f32 to vector<8x32xf32>
    %c0_i32_70 = arith.constant 0 : i32
    %c8_i32_71 = arith.constant 8 : i32
    %219 = arith.muli %c0_i32_70, %c8_i32_71 : i32
    %220 = tpu.assume_multiple %219, 8 : i32
    %221 = arith.index_cast %220 : i32 to index
    %c0_72 = arith.constant 0 : index
    %222 = vector.load %arg10[%221, %c0_72] : memref<64x128xf32, #tpu.memory_space<vmem>>, vector<8x128xf32>
    %223 = arith.truncf %217 : vector<8x32xf32> to vector<8x32xbf16>
    %cst_73 = arith.constant dense<0.000000e+00> : vector<8x128xf32>
    %224 = tpu.matmul %223, %209, %cst_73 {dimension_numbers = #tpu.dot_dimension_numbers<[1], [0], [0], [1], [0, 0, 1, 1], [], []>} : vector<8x32xbf16>, vector<32x128xbf16>, vector<8x128xf32> -> vector<8x128xf32>
    %225 = arith.addf %222, %224 : vector<8x128xf32>
    %226 = arith.negf %225 : vector<8x128xf32>
    %227 = math.exp %226 : vector<8x128xf32>
    %cst_74 = arith.constant 1.000000e+00 : f32
    %228 = vector.broadcast %cst_74 : f32 to vector<8x128xf32>
    %229 = arith.addf %228, %227 : vector<8x128xf32>
    %230 = arith.divf %228, %229 : vector<8x128xf32>
    %231 = vector.extract_strided_slice %225 {offsets = [0, 64], sizes = [8, 32], strides = [1, 1]} : vector<8x128xf32> to vector<8x32xf32>
    %232 = math.tanh %231 : vector<8x32xf32>
    %233 = vector.extract_strided_slice %230 {offsets = [0, 0], sizes = [8, 32], strides = [1, 1]} : vector<8x128xf32> to vector<8x32xf32>
    %234 = vector.extract_strided_slice %230 {offsets = [0, 32], sizes = [8, 32], strides = [1, 1]} : vector<8x128xf32> to vector<8x32xf32>
    %235 = vector.extract_strided_slice %230 {offsets = [0, 96], sizes = [8, 32], strides = [1, 1]} : vector<8x128xf32> to vector<8x32xf32>
    %236 = arith.mulf %234, %218 : vector<8x32xf32>
    %237 = arith.mulf %233, %232 : vector<8x32xf32>
    %238 = arith.addf %236, %237 : vector<8x32xf32>
    %239 = math.tanh %238 : vector<8x32xf32>
    %240 = arith.mulf %235, %239 : vector<8x32xf32>
    %c1_i32_75 = arith.constant 1 : i32
    %c8_i32_76 = arith.constant 8 : i32
    %241 = arith.muli %c1_i32_75, %c8_i32_76 : i32
    %242 = tpu.assume_multiple %241, 8 : i32
    %243 = arith.index_cast %242 : i32 to index
    %c0_77 = arith.constant 0 : index
    %244 = vector.load %arg10[%243, %c0_77] : memref<64x128xf32, #tpu.memory_space<vmem>>, vector<8x128xf32>
    %245 = arith.truncf %240 : vector<8x32xf32> to vector<8x32xbf16>
    %cst_78 = arith.constant dense<0.000000e+00> : vector<8x128xf32>
    %246 = tpu.matmul %245, %209, %cst_78 {dimension_numbers = #tpu.dot_dimension_numbers<[1], [0], [0], [1], [0, 0, 1, 1], [], []>} : vector<8x32xbf16>, vector<32x128xbf16>, vector<8x128xf32> -> vector<8x128xf32>
    %247 = arith.addf %244, %246 : vector<8x128xf32>
    %248 = arith.negf %247 : vector<8x128xf32>
    %249 = math.exp %248 : vector<8x128xf32>
    %cst_79 = arith.constant 1.000000e+00 : f32
    %250 = vector.broadcast %cst_79 : f32 to vector<8x128xf32>
    %251 = arith.addf %250, %249 : vector<8x128xf32>
    %252 = arith.divf %250, %251 : vector<8x128xf32>
    %253 = vector.extract_strided_slice %247 {offsets = [0, 64], sizes = [8, 32], strides = [1, 1]} : vector<8x128xf32> to vector<8x32xf32>
    %254 = math.tanh %253 : vector<8x32xf32>
    %255 = vector.extract_strided_slice %252 {offsets = [0, 0], sizes = [8, 32], strides = [1, 1]} : vector<8x128xf32> to vector<8x32xf32>
    %256 = vector.extract_strided_slice %252 {offsets = [0, 32], sizes = [8, 32], strides = [1, 1]} : vector<8x128xf32> to vector<8x32xf32>
    %257 = vector.extract_strided_slice %252 {offsets = [0, 96], sizes = [8, 32], strides = [1, 1]} : vector<8x128xf32> to vector<8x32xf32>
    %258 = arith.mulf %256, %238 : vector<8x32xf32>
    %259 = arith.mulf %255, %254 : vector<8x32xf32>
    %260 = arith.addf %258, %259 : vector<8x32xf32>
    %261 = math.tanh %260 : vector<8x32xf32>
    %262 = arith.mulf %257, %261 : vector<8x32xf32>
    %c2_i32_80 = arith.constant 2 : i32
    %c8_i32_81 = arith.constant 8 : i32
    %263 = arith.muli %c2_i32_80, %c8_i32_81 : i32
    %264 = tpu.assume_multiple %263, 8 : i32
    %265 = arith.index_cast %264 : i32 to index
    %c0_82 = arith.constant 0 : index
    %266 = vector.load %arg10[%265, %c0_82] : memref<64x128xf32, #tpu.memory_space<vmem>>, vector<8x128xf32>
    %267 = arith.truncf %262 : vector<8x32xf32> to vector<8x32xbf16>
    %cst_83 = arith.constant dense<0.000000e+00> : vector<8x128xf32>
    %268 = tpu.matmul %267, %209, %cst_83 {dimension_numbers = #tpu.dot_dimension_numbers<[1], [0], [0], [1], [0, 0, 1, 1], [], []>} : vector<8x32xbf16>, vector<32x128xbf16>, vector<8x128xf32> -> vector<8x128xf32>
    %269 = arith.addf %266, %268 : vector<8x128xf32>
    %270 = arith.negf %269 : vector<8x128xf32>
    %271 = math.exp %270 : vector<8x128xf32>
    %cst_84 = arith.constant 1.000000e+00 : f32
    %272 = vector.broadcast %cst_84 : f32 to vector<8x128xf32>
    %273 = arith.addf %272, %271 : vector<8x128xf32>
    %274 = arith.divf %272, %273 : vector<8x128xf32>
    %275 = vector.extract_strided_slice %269 {offsets = [0, 64], sizes = [8, 32], strides = [1, 1]} : vector<8x128xf32> to vector<8x32xf32>
    %276 = math.tanh %275 : vector<8x32xf32>
    %277 = vector.extract_strided_slice %274 {offsets = [0, 0], sizes = [8, 32], strides = [1, 1]} : vector<8x128xf32> to vector<8x32xf32>
    %278 = vector.extract_strided_slice %274 {offsets = [0, 32], sizes = [8, 32], strides = [1, 1]} : vector<8x128xf32> to vector<8x32xf32>
    %279 = vector.extract_strided_slice %274 {offsets = [0, 96], sizes = [8, 32], strides = [1, 1]} : vector<8x128xf32> to vector<8x32xf32>
    %280 = arith.mulf %278, %260 : vector<8x32xf32>
    %281 = arith.mulf %277, %276 : vector<8x32xf32>
    %282 = arith.addf %280, %281 : vector<8x32xf32>
    %283 = math.tanh %282 : vector<8x32xf32>
    %284 = arith.mulf %279, %283 : vector<8x32xf32>
    %c3_i32_85 = arith.constant 3 : i32
    %c8_i32_86 = arith.constant 8 : i32
    %285 = arith.muli %c3_i32_85, %c8_i32_86 : i32
    %286 = tpu.assume_multiple %285, 8 : i32
    %287 = arith.index_cast %286 : i32 to index
    %c0_87 = arith.constant 0 : index
    %288 = vector.load %arg10[%287, %c0_87] : memref<64x128xf32, #tpu.memory_space<vmem>>, vector<8x128xf32>
    %289 = arith.truncf %284 : vector<8x32xf32> to vector<8x32xbf16>
    %cst_88 = arith.constant dense<0.000000e+00> : vector<8x128xf32>
    %290 = tpu.matmul %289, %209, %cst_88 {dimension_numbers = #tpu.dot_dimension_numbers<[1], [0], [0], [1], [0, 0, 1, 1], [], []>} : vector<8x32xbf16>, vector<32x128xbf16>, vector<8x128xf32> -> vector<8x128xf32>
    %291 = arith.addf %288, %290 : vector<8x128xf32>
    %292 = arith.negf %291 : vector<8x128xf32>
    %293 = math.exp %292 : vector<8x128xf32>
    %cst_89 = arith.constant 1.000000e+00 : f32
    %294 = vector.broadcast %cst_89 : f32 to vector<8x128xf32>
    %295 = arith.addf %294, %293 : vector<8x128xf32>
    %296 = arith.divf %294, %295 : vector<8x128xf32>
    %297 = vector.extract_strided_slice %291 {offsets = [0, 64], sizes = [8, 32], strides = [1, 1]} : vector<8x128xf32> to vector<8x32xf32>
    %298 = math.tanh %297 : vector<8x32xf32>
    %299 = vector.extract_strided_slice %296 {offsets = [0, 0], sizes = [8, 32], strides = [1, 1]} : vector<8x128xf32> to vector<8x32xf32>
    %300 = vector.extract_strided_slice %296 {offsets = [0, 32], sizes = [8, 32], strides = [1, 1]} : vector<8x128xf32> to vector<8x32xf32>
    %301 = vector.extract_strided_slice %296 {offsets = [0, 96], sizes = [8, 32], strides = [1, 1]} : vector<8x128xf32> to vector<8x32xf32>
    %302 = arith.mulf %300, %282 : vector<8x32xf32>
    %303 = arith.mulf %299, %298 : vector<8x32xf32>
    %304 = arith.addf %302, %303 : vector<8x32xf32>
    %305 = math.tanh %304 : vector<8x32xf32>
    %306 = arith.mulf %301, %305 : vector<8x32xf32>
    %c4_i32_90 = arith.constant 4 : i32
    %c8_i32_91 = arith.constant 8 : i32
    %307 = arith.muli %c4_i32_90, %c8_i32_91 : i32
    %308 = tpu.assume_multiple %307, 8 : i32
    %309 = arith.index_cast %308 : i32 to index
    %c0_92 = arith.constant 0 : index
    %310 = vector.load %arg10[%309, %c0_92] : memref<64x128xf32, #tpu.memory_space<vmem>>, vector<8x128xf32>
    %311 = arith.truncf %306 : vector<8x32xf32> to vector<8x32xbf16>
    %cst_93 = arith.constant dense<0.000000e+00> : vector<8x128xf32>
    %312 = tpu.matmul %311, %209, %cst_93 {dimension_numbers = #tpu.dot_dimension_numbers<[1], [0], [0], [1], [0, 0, 1, 1], [], []>} : vector<8x32xbf16>, vector<32x128xbf16>, vector<8x128xf32> -> vector<8x128xf32>
    %313 = arith.addf %310, %312 : vector<8x128xf32>
    %314 = arith.negf %313 : vector<8x128xf32>
    %315 = math.exp %314 : vector<8x128xf32>
    %cst_94 = arith.constant 1.000000e+00 : f32
    %316 = vector.broadcast %cst_94 : f32 to vector<8x128xf32>
    %317 = arith.addf %316, %315 : vector<8x128xf32>
    %318 = arith.divf %316, %317 : vector<8x128xf32>
    %319 = vector.extract_strided_slice %313 {offsets = [0, 64], sizes = [8, 32], strides = [1, 1]} : vector<8x128xf32> to vector<8x32xf32>
    %320 = math.tanh %319 : vector<8x32xf32>
    %321 = vector.extract_strided_slice %318 {offsets = [0, 0], sizes = [8, 32], strides = [1, 1]} : vector<8x128xf32> to vector<8x32xf32>
    %322 = vector.extract_strided_slice %318 {offsets = [0, 32], sizes = [8, 32], strides = [1, 1]} : vector<8x128xf32> to vector<8x32xf32>
    %323 = vector.extract_strided_slice %318 {offsets = [0, 96], sizes = [8, 32], strides = [1, 1]} : vector<8x128xf32> to vector<8x32xf32>
    %324 = arith.mulf %322, %304 : vector<8x32xf32>
    %325 = arith.mulf %321, %320 : vector<8x32xf32>
    %326 = arith.addf %324, %325 : vector<8x32xf32>
    %327 = math.tanh %326 : vector<8x32xf32>
    %328 = arith.mulf %323, %327 : vector<8x32xf32>
    %c5_i32_95 = arith.constant 5 : i32
    %c8_i32_96 = arith.constant 8 : i32
    %329 = arith.muli %c5_i32_95, %c8_i32_96 : i32
    %330 = tpu.assume_multiple %329, 8 : i32
    %331 = arith.index_cast %330 : i32 to index
    %c0_97 = arith.constant 0 : index
    %332 = vector.load %arg10[%331, %c0_97] : memref<64x128xf32, #tpu.memory_space<vmem>>, vector<8x128xf32>
    %333 = arith.truncf %328 : vector<8x32xf32> to vector<8x32xbf16>
    %cst_98 = arith.constant dense<0.000000e+00> : vector<8x128xf32>
    %334 = tpu.matmul %333, %209, %cst_98 {dimension_numbers = #tpu.dot_dimension_numbers<[1], [0], [0], [1], [0, 0, 1, 1], [], []>} : vector<8x32xbf16>, vector<32x128xbf16>, vector<8x128xf32> -> vector<8x128xf32>
    %335 = arith.addf %332, %334 : vector<8x128xf32>
    %336 = arith.negf %335 : vector<8x128xf32>
    %337 = math.exp %336 : vector<8x128xf32>
    %cst_99 = arith.constant 1.000000e+00 : f32
    %338 = vector.broadcast %cst_99 : f32 to vector<8x128xf32>
    %339 = arith.addf %338, %337 : vector<8x128xf32>
    %340 = arith.divf %338, %339 : vector<8x128xf32>
    %341 = vector.extract_strided_slice %335 {offsets = [0, 64], sizes = [8, 32], strides = [1, 1]} : vector<8x128xf32> to vector<8x32xf32>
    %342 = math.tanh %341 : vector<8x32xf32>
    %343 = vector.extract_strided_slice %340 {offsets = [0, 0], sizes = [8, 32], strides = [1, 1]} : vector<8x128xf32> to vector<8x32xf32>
    %344 = vector.extract_strided_slice %340 {offsets = [0, 32], sizes = [8, 32], strides = [1, 1]} : vector<8x128xf32> to vector<8x32xf32>
    %345 = vector.extract_strided_slice %340 {offsets = [0, 96], sizes = [8, 32], strides = [1, 1]} : vector<8x128xf32> to vector<8x32xf32>
    %346 = arith.mulf %344, %326 : vector<8x32xf32>
    %347 = arith.mulf %343, %342 : vector<8x32xf32>
    %348 = arith.addf %346, %347 : vector<8x32xf32>
    %349 = math.tanh %348 : vector<8x32xf32>
    %350 = arith.mulf %345, %349 : vector<8x32xf32>
    %c6_i32_100 = arith.constant 6 : i32
    %c8_i32_101 = arith.constant 8 : i32
    %351 = arith.muli %c6_i32_100, %c8_i32_101 : i32
    %352 = tpu.assume_multiple %351, 8 : i32
    %353 = arith.index_cast %352 : i32 to index
    %c0_102 = arith.constant 0 : index
    %354 = vector.load %arg10[%353, %c0_102] : memref<64x128xf32, #tpu.memory_space<vmem>>, vector<8x128xf32>
    %355 = arith.truncf %350 : vector<8x32xf32> to vector<8x32xbf16>
    %cst_103 = arith.constant dense<0.000000e+00> : vector<8x128xf32>
    %356 = tpu.matmul %355, %209, %cst_103 {dimension_numbers = #tpu.dot_dimension_numbers<[1], [0], [0], [1], [0, 0, 1, 1], [], []>} : vector<8x32xbf16>, vector<32x128xbf16>, vector<8x128xf32> -> vector<8x128xf32>
    %357 = arith.addf %354, %356 : vector<8x128xf32>
    %358 = arith.negf %357 : vector<8x128xf32>
    %359 = math.exp %358 : vector<8x128xf32>
    %cst_104 = arith.constant 1.000000e+00 : f32
    %360 = vector.broadcast %cst_104 : f32 to vector<8x128xf32>
    %361 = arith.addf %360, %359 : vector<8x128xf32>
    %362 = arith.divf %360, %361 : vector<8x128xf32>
    %363 = vector.extract_strided_slice %357 {offsets = [0, 64], sizes = [8, 32], strides = [1, 1]} : vector<8x128xf32> to vector<8x32xf32>
    %364 = math.tanh %363 : vector<8x32xf32>
    %365 = vector.extract_strided_slice %362 {offsets = [0, 0], sizes = [8, 32], strides = [1, 1]} : vector<8x128xf32> to vector<8x32xf32>
    %366 = vector.extract_strided_slice %362 {offsets = [0, 32], sizes = [8, 32], strides = [1, 1]} : vector<8x128xf32> to vector<8x32xf32>
    %367 = vector.extract_strided_slice %362 {offsets = [0, 96], sizes = [8, 32], strides = [1, 1]} : vector<8x128xf32> to vector<8x32xf32>
    %368 = arith.mulf %366, %348 : vector<8x32xf32>
    %369 = arith.mulf %365, %364 : vector<8x32xf32>
    %370 = arith.addf %368, %369 : vector<8x32xf32>
    %371 = math.tanh %370 : vector<8x32xf32>
    %372 = arith.mulf %367, %371 : vector<8x32xf32>
    %c7_i32_105 = arith.constant 7 : i32
    %c8_i32_106 = arith.constant 8 : i32
    %373 = arith.muli %c7_i32_105, %c8_i32_106 : i32
    %374 = tpu.assume_multiple %373, 8 : i32
    %375 = arith.index_cast %374 : i32 to index
    %c0_107 = arith.constant 0 : index
    %376 = vector.load %arg10[%375, %c0_107] : memref<64x128xf32, #tpu.memory_space<vmem>>, vector<8x128xf32>
    %377 = arith.truncf %372 : vector<8x32xf32> to vector<8x32xbf16>
    %cst_108 = arith.constant dense<0.000000e+00> : vector<8x128xf32>
    %378 = tpu.matmul %377, %209, %cst_108 {dimension_numbers = #tpu.dot_dimension_numbers<[1], [0], [0], [1], [0, 0, 1, 1], [], []>} : vector<8x32xbf16>, vector<32x128xbf16>, vector<8x128xf32> -> vector<8x128xf32>
    %379 = arith.addf %376, %378 : vector<8x128xf32>
    %380 = arith.negf %379 : vector<8x128xf32>
    %381 = math.exp %380 : vector<8x128xf32>
    %cst_109 = arith.constant 1.000000e+00 : f32
    %382 = vector.broadcast %cst_109 : f32 to vector<8x128xf32>
    %383 = arith.addf %382, %381 : vector<8x128xf32>
    %384 = arith.divf %382, %383 : vector<8x128xf32>
    %385 = vector.extract_strided_slice %379 {offsets = [0, 64], sizes = [8, 32], strides = [1, 1]} : vector<8x128xf32> to vector<8x32xf32>
    %386 = math.tanh %385 : vector<8x32xf32>
    %387 = vector.extract_strided_slice %384 {offsets = [0, 0], sizes = [8, 32], strides = [1, 1]} : vector<8x128xf32> to vector<8x32xf32>
    %388 = vector.extract_strided_slice %384 {offsets = [0, 32], sizes = [8, 32], strides = [1, 1]} : vector<8x128xf32> to vector<8x32xf32>
    %389 = vector.extract_strided_slice %384 {offsets = [0, 96], sizes = [8, 32], strides = [1, 1]} : vector<8x128xf32> to vector<8x32xf32>
    %390 = arith.mulf %388, %370 : vector<8x32xf32>
    %391 = arith.mulf %387, %386 : vector<8x32xf32>
    %392 = arith.addf %390, %391 : vector<8x32xf32>
    %393 = math.tanh %392 : vector<8x32xf32>
    %394 = arith.mulf %389, %393 : vector<8x32xf32>
    %c8_i32_110 = arith.constant 8 : i32
    %c1 = arith.constant 1 : index
    %c0_111 = arith.constant 0 : index
    %c0_112 = arith.constant 0 : index
    %395 = vector.load %arg7[%c1, %c0_111, %c0_112] : memref<2x8x32xf32, #tpu.memory_space<vmem>>, vector<1x8x32xf32>
    %396 = vector.shape_cast %395 : vector<1x8x32xf32> to vector<8x32xf32>
    %397 = vector.shape_cast %394 : vector<8x32xf32> to vector<1x8x32xf32>
    tpu.vector_store %arg7[%c1, %c0_111, %c0_112], %397 {strides = array<i32>} : memref<2x8x32xf32, #tpu.memory_space<vmem>>, vector<1x8x32xf32>,
    %c1_113 = arith.constant 1 : index
    %c0_114 = arith.constant 0 : index
    %c0_115 = arith.constant 0 : index
    %398 = vector.load %arg8[%c1_113, %c0_114, %c0_115] : memref<2x8x32xf32, #tpu.memory_space<vmem>>, vector<1x8x32xf32>
    %399 = vector.shape_cast %398 : vector<1x8x32xf32> to vector<8x32xf32>
    %400 = vector.shape_cast %392 : vector<8x32xf32> to vector<1x8x32xf32>
    tpu.vector_store %arg8[%c1_113, %c0_114, %c0_115], %400 {strides = array<i32>} : memref<2x8x32xf32, #tpu.memory_space<vmem>>, vector<1x8x32xf32>,
    return
  }
}

</mosaic_0001>

<llo_original>
// kernel: tpu_custom_call.1
$region0: #{tpu_custom_call.1}
  #allocation0 [shape = 'u32[]', space=smem, size = 0x4, offset = 0x4, fixed_abs, tag = 'smem constant byte address 0x4 - core index']
  #allocation1 [shape = 'u32[144,128]{1,0:T(1,128)}', space=vmem, size = 0x12000, scoped, tag = 'internal scratch']
  #allocation2 [shape = 'f32[64,32]{1,0:T(8,128)}', space=vmem, size = 0x8000, scoped, tag = 'scratch operand']
  #allocation3 [shape = 'f32[64,128]{1,0:T(8,128)}', space=vmem, size = 0x8000, scoped, tag = 'scratch operand']
  %s0 = inlined_call_operand.hbm [shape: bf16[64,16], index: 0, kind: input, shape index: {}]
  %s1 = inlined_call_operand.hbm [shape: bf16[16,128], index: 1, kind: input, shape index: {}]
  %s2 = inlined_call_operand.hbm [shape: bf16[32,128], index: 2, kind: input, shape index: {}]
  %s3 = inlined_call_operand.hbm [shape: f32[1,128], index: 3, kind: input, shape index: {}]
  %s4 = inlined_call_operand.hbm [shape: bf16[32,128], index: 4, kind: input, shape index: {}]
  %s5 = inlined_call_operand.hbm [shape: bf16[32,128], index: 5, kind: input, shape index: {}]
  %s6 = inlined_call_operand.hbm [shape: f32[1,128], index: 6, kind: input, shape index: {}]
  %s7 = inlined_call_operand.hbm [shape: f32[2,8,32], index: 7, kind: output, shape index: {0}]
  %s8 = inlined_call_operand.hbm [shape: f32[2,8,32], index: 8, kind: output, shape index: {1}]
  %9 = xla_tuple %s7, %s8
  %s10 = sld [smem:[#allocation0]]
  $region74: #{tpu_custom_call.1} parent=0
    _
  %s12 = ssub.s32 1, %s10
  %s13 = scalar_select 0, %s12, %s10
  $region1: #{tpu_custom_call.1} parent=0
    #allocation4 [shape = 'u8[16384]{0}', space=vmem, size = 0x4000, scoped, tag = 'input window, operand 0, single buffered']
    #allocation5 [shape = 's32[1]{0}', space=sflag, size = 0x4, scoped, tag = 'scoped memory for tpu_custom_call.1']
    #allocation6 [shape = 's32[1]{0}', space=sflag, size = 0x4, scoped, tag = 'scoped memory for tpu_custom_call.1']
    #allocation7 [shape = 'u8[4096]{0}', space=vmem, size = 0x1000, scoped, tag = 'input window, operand 1, single buffered']
    #allocation8 [shape = 's32[1]{0}', space=sflag, size = 0x4, scoped, tag = 'scoped memory for tpu_custom_call.1']
    #allocation9 [shape = 'u8[8192]{0}', space=vmem, size = 0x2000, scoped, tag = 'input window, operand 2, single buffered']
    #allocation10 [shape = 'u8[512]{0}', space=vmem, size = 0x400, scoped, tag = 'input window, operand 3, single buffered']
    #allocation11 [shape = 's32[1]{0}', space=sflag, size = 0x4, scoped, tag = 'scoped memory for tpu_custom_call.1']
    #allocation12 [shape = 'u8[8192]{0}', space=vmem, size = 0x2000, scoped, tag = 'input window, operand 4, single buffered']
    #allocation13 [shape = 'u8[8192]{0}', space=vmem, size = 0x2000, scoped, tag = 'input window, operand 5, single buffered']
    #allocation14 [shape = 's32[1]{0}', space=sflag, size = 0x4, scoped, tag = 'scoped memory for tpu_custom_call.1']
    #allocation15 [shape = 'u8[512]{0}', space=vmem, size = 0x400, scoped, tag = 'input window, operand 6, single buffered']
    #allocation16 [shape = 'u8[8192]{0}', space=vmem, size = 0x2000, scoped, tag = 'output window, operand 0, single buffered']
    #allocation17 [shape = 'u8[8192]{0}', space=vmem, size = 0x2000, scoped, tag = 'output window, operand 1, single buffered']
    #allocation18 [shape = 's32[1]{0}', space=sflag, size = 0x4, scoped, tag = 'scoped memory for tpu_custom_call.1']
    %14 = vsyncpa [#allocation5], 0
    %15 = vsyncpa [#allocation8], 0
    %16 = vsyncpa [#allocation11], 0
    %17 = vsyncpa [#allocation14], 0
    %18 = vsyncpa [#allocation6], 0
    %19 = vsyncpa [#allocation18], 0
    // Predicated region
    $region2: #{tpu_custom_call.1} parent=1 // pred_check
      _
    $region3: #{tpu_custom_call.1} parent=1 // pred_check_branch
      %21 = sbr.rel (0) target = $region5
    $region4: #{tpu_custom_call.1} parent=1 // pred_region
      %s23 = ssub.s32 512, 512
      %24 = vsyncadd [#allocation5], %s23
      %s25 = sshll.u32 [#allocation4], 4
      %s26 = int_to_ptr.vmem [resolvable:$true] %s25
      %31 = dma.hbm_to_vmem [thread:$0]  %s0, 512, %s26, [#allocation5], 64, 64, 4
    $region5: #{tpu_custom_call.1} parent=1 // pred_fallthru
      _
    // Predicated region
    $region6: #{tpu_custom_call.1} parent=1 // pred_check
      _
    $region7: #{tpu_custom_call.1} parent=1 // pred_check_branch
      %33 = sbr.rel (0) target = $region9
    $region8: #{tpu_custom_call.1} parent=1 // pred_region
      %s35 = ssub.s32 128, 128
      %36 = vsyncadd [#allocation8], %s35
      %s37 = sshll.u32 [#allocation7], 4
      %s38 = int_to_ptr.vmem [resolvable:$true] %s37
      %43 = dma.hbm_to_vmem [thread:$0]  %s1, 128, %s38, [#allocation8], 64, 64, 4
    $region9: #{tpu_custom_call.1} parent=1 // pred_fallthru
      _
    // Predicated region
    $region10: #{tpu_custom_call.1} parent=1 // pred_check
      _
    $region11: #{tpu_custom_call.1} parent=1 // pred_check_branch
      %45 = sbr.rel (0) target = $region13
    $region12: #{tpu_custom_call.1} parent=1 // pred_region
      %s47 = ssub.s32 256, 256
      %48 = vsyncadd [#allocation8], %s47
      %s49 = sshll.u32 [#allocation9], 4
      %s50 = int_to_ptr.vmem [resolvable:$true] %s49
      %55 = dma.hbm_to_vmem [thread:$0]  %s2, 256, %s50, [#allocation8], 64, 64, 4
    $region13: #{tpu_custom_call.1} parent=1 // pred_fallthru
      _
    // Predicated region
    $region14: #{tpu_custom_call.1} parent=1 // pred_check
      _
    $region15: #{tpu_custom_call.1} parent=1 // pred_check_branch
      %57 = sbr.rel (0) target = $region17
    $region16: #{tpu_custom_call.1} parent=1 // pred_region
      %s59 = ssub.s32 16, 16
      %60 = vsyncadd [#allocation11], %s59
      %s62 = sshll.u32 [#allocation10], 4
      %s63 = int_to_ptr.vmem [resolvable:$true] %s62
      %65 = dma.hbm_to_vmem [thread:$0]  %s3, 16, %s63, [#allocation11]
    $region17: #{tpu_custom_call.1} parent=1 // pred_fallthru
      _
    // Predicated region
    $region18: #{tpu_custom_call.1} parent=1 // pred_check
      _
    $region19: #{tpu_custom_call.1} parent=1 // pred_check_branch
      %67 = sbr.rel (0) target = $region21
    $region20: #{tpu_custom_call.1} parent=1 // pred_region
      %s69 = ssub.s32 256, 256
      %70 = vsyncadd [#allocation11], %s69
      %s71 = sshll.u32 [#allocation12], 4
      %s72 = int_to_ptr.vmem [resolvable:$true] %s71
      %77 = dma.hbm_to_vmem [thread:$0]  %s4, 256, %s72, [#allocation11], 64, 64, 4
    $region21: #{tpu_custom_call.1} parent=1 // pred_fallthru
      _
    // Predicated region
    $region22: #{tpu_custom_call.1} parent=1 // pred_check
      _
    $region23: #{tpu_custom_call.1} parent=1 // pred_check_branch
      %79 = sbr.rel (0) target = $region25
    $region24: #{tpu_custom_call.1} parent=1 // pred_region
      %s81 = ssub.s32 256, 256
      %82 = vsyncadd [#allocation14], %s81
      %s83 = sshll.u32 [#allocation13], 4
      %s84 = int_to_ptr.vmem [resolvable:$true] %s83
      %89 = dma.hbm_to_vmem [thread:$0]  %s5, 256, %s84, [#allocation14], 64, 64, 4
    $region25: #{tpu_custom_call.1} parent=1 // pred_fallthru
      _
    // Predicated region
    $region26: #{tpu_custom_call.1} parent=1 // pred_check
      _
    $region27: #{tpu_custom_call.1} parent=1 // pred_check_branch
      %91 = sbr.rel (0) target = $region29
    $region28: #{tpu_custom_call.1} parent=1 // pred_region
      %s93 = ssub.s32 16, 16
      %94 = vsyncadd [#allocation14], %s93
      %s96 = sshll.u32 [#allocation15], 4
      %s97 = int_to_ptr.vmem [resolvable:$true] %s96
      %99 = dma.hbm_to_vmem [thread:$0]  %s6, 16, %s97, [#allocation14]
    $region29: #{tpu_custom_call.1} parent=1 // pred_fallthru
      _
    // Predicated region
    $region30: #{tpu_custom_call.1} parent=1 // pred_check
      _
    $region31: #{tpu_custom_call.1} parent=1 // pred_check_branch
      %101 = sbr.rel (0) target = $region33
    $region32: #{tpu_custom_call.1} parent=1 // pred_region
      %102 = dma.done [#allocation5], 512
    $region33: #{tpu_custom_call.1} parent=1 // pred_fallthru
      _
    // Predicated region
    $region34: #{tpu_custom_call.1} parent=1 // pred_check
      _
    $region35: #{tpu_custom_call.1} parent=1 // pred_check_branch
      %104 = sbr.rel (0) target = $region37
    $region36: #{tpu_custom_call.1} parent=1 // pred_region
      %105 = dma.done [#allocation8], 128
    $region37: #{tpu_custom_call.1} parent=1 // pred_fallthru
      _
    // Predicated region
    $region38: #{tpu_custom_call.1} parent=1 // pred_check
      _
    $region39: #{tpu_custom_call.1} parent=1 // pred_check_branch
      %107 = sbr.rel (0) target = $region41
    $region40: #{tpu_custom_call.1} parent=1 // pred_region
      %108 = dma.done [#allocation8], 256
    $region41: #{tpu_custom_call.1} parent=1 // pred_fallthru
      _
    // Predicated region
    $region42: #{tpu_custom_call.1} parent=1 // pred_check
      _
    $region43: #{tpu_custom_call.1} parent=1 // pred_check_branch
      %110 = sbr.rel (0) target = $region45
    $region44: #{tpu_custom_call.1} parent=1 // pred_region
      %111 = dma.done [#allocation11], 16
    $region45: #{tpu_custom_call.1} parent=1 // pred_fallthru
      _
    // Predicated region
    $region46: #{tpu_custom_call.1} parent=1 // pred_check
      _
    $region47: #{tpu_custom_call.1} parent=1 // pred_check_branch
      %113 = sbr.rel (0) target = $region49
    $region48: #{tpu_custom_call.1} parent=1 // pred_region
      %114 = dma.done [#allocation11], 256
    $region49: #{tpu_custom_call.1} parent=1 // pred_fallthru
      _
    // Predicated region
    $region50: #{tpu_custom_call.1} parent=1 // pred_check
      _
    $region51: #{tpu_custom_call.1} parent=1 // pred_check_branch
      %116 = sbr.rel (0) target = $region53
    $region52: #{tpu_custom_call.1} parent=1 // pred_region
      %117 = dma.done [#allocation14], 256
    $region53: #{tpu_custom_call.1} parent=1 // pred_fallthru
      _
    // Predicated region
    $region54: #{tpu_custom_call.1} parent=1 // pred_check
      _
    $region55: #{tpu_custom_call.1} parent=1 // pred_check_branch
      %119 = sbr.rel (0) target = $region57
    $region56: #{tpu_custom_call.1} parent=1 // pred_region
      %120 = dma.done [#allocation14], 16
    $region57: #{tpu_custom_call.1} parent=1 // pred_fallthru
      _
    %v122 = vld [vmem:[#allocation7] sm:$0xf]
    %v123 = vld [vmem:[#allocation7 + $0x4] sm:$0xf]
    %v124 = vld [vmem:[#allocation9] sm:$0xf]
    %v125 = vld [vmem:[#allocation9 + $0x4] sm:$0xf]
    %v126 = vld [vmem:[#allocation9 + $0x8] sm:$0xf]
    %v127 = vld [vmem:[#allocation9 + $0xc] sm:$0xf]
    %v128 = vld [vmem:[#allocation10] sm:$0x1]
    %v129 = vld [vmem:[#allocation4] sm:$0xf]
    %v130 = vld [vmem:[#allocation4 + $0x4] sm:$0xf]
    %v131 = vld [vmem:[#allocation4 + $0x8] sm:$0xf]
    %v132 = vld [vmem:[#allocation4 + $0xc] sm:$0xf]
    %v133 = vld [vmem:[#allocation4 + $0x10] sm:$0xf]
    %v134 = vld [vmem:[#allocation4 + $0x14] sm:$0xf]
    %v135 = vld [vmem:[#allocation4 + $0x18] sm:$0xf]
    %v136 = vld [vmem:[#allocation4 + $0x1c] sm:$0xf]
    %v138 = vlaneseq
    %v139 = vshrl.u32 %v138, 7
    %v140 = vsub.s32 0, %v139
    %v141 = vrot.slane %v128, %v140
    %v151 = vunpack.c.l.b16 %v129
    %v152 = vunpack.c.l.b16 %v130
    %v153 = vunpack.c.l.b16 %v131
    %v154 = vunpack.c.l.b16 %v132
    %v155 = vunpack.c.l.b16 %v133
    %v156 = vunpack.c.l.b16 %v134
    %v157 = vunpack.c.l.b16 %v135
    %v158 = vunpack.c.l.b16 %v136
    %v159 = vpack.c.b16 %v152, %v151
    %v160 = vpack.c.b16 %v154, %v153
    %v161 = vpack.c.b16 %v156, %v155
    %v162 = vpack.c.b16 %v158, %v157
    %v165 = vunpack.c.l.b16 %v122
    %v166 = vunpack.c.l.b16 %v123
    %v167 = vpack.c.b16 %v166, %v165
    %vm169 = vcmask 130048
    %v171 = vsel %vm169, %v159, 0
    %v174 = vsel %vm169, %v160, 0
    %v177 = vsel %vm169, %v161, 0
    %v180 = vsel %vm169, %v162, 0
    %182 = vmatprep.subr.bf16.mxu0 0
    %183 = vmatpush1.bf16.msra.mxu0 %v167
    %184 = vmatprep.subr.bf16.mxu0 0
    %185 = vmatpush1.bf16.msra.mxu0 0
    %186 = vmatprep.subr.bf16.mxu0 0
    %187 = vmatpush1.bf16.msra.mxu0 0
    %188 = vmatprep.subr.bf16.mxu0 0
    %189 = vmatpush1.bf16.msra.mxu0 0
    %190 = vmatprep.subr.bf16.mxu0 0
    %191 = vmatpush1.bf16.msra.mxu0 0
    %192 = vmatprep.subr.bf16.mxu0 0
    %193 = vmatpush1.bf16.msra.mxu0 0
    %194 = vmatprep.subr.bf16.mxu0 0
    %195 = vmatpush1.bf16.msra.mxu0 0
    %196 = vmatprep.subr.bf16.mxu0 0
    %197 = vmatpush1.bf16.msra.mxu0 0
    %198 = vmatprep.subr.bf16.mxu0 0
    %199 = vmatpush1.bf16.msra.mxu0 0
    %200 = vmatprep.subr.bf16.mxu0 0
    %201 = vmatpush1.bf16.msra.mxu0 0
    %202 = vmatprep.subr.bf16.mxu0 0
    %203 = vmatpush1.bf16.msra.mxu0 0
    %204 = vmatprep.subr.bf16.mxu0 0
    %205 = vmatpush1.bf16.msra.mxu0 0
    %206 = vmatprep.subr.bf16.mxu0 0
    %207 = vmatpush1.bf16.msra.mxu0 0
    %208 = vmatprep.subr.bf16.mxu0 0
    %209 = vmatpush1.bf16.msra.mxu0 0
    %210 = vmatprep.subr.bf16.mxu0 0
    %211 = vmatpush1.bf16.msra.mxu0 0
    %212 = vmatprep.subr.bf16.mxu0 0
    %213 = vmatpush1.bf16.msra.mxu0 0
    %214 = vmatprep.mubr.bf16.mxu0 0
    %215 = vmatmul.mubr.bf16.gmra.mrb[0].mxu0 %v171
    %v216 = vpop.f32.mrb[0].mxu0
    %v217 = vadd.f32 %v141, %v216
    %v218 = vpop.f32.mrb[0].mxu0
    %v219 = vpop.f32.mrb[0].mxu0
    %v220 = vadd.f32 %v141, %v219
    %v221 = vpop.f32.mrb[0].mxu0
    %222 = vmatprep.mubr.bf16.mxu0 0
    %223 = vmatmul.mubr.bf16.gmra.mrb[0].mxu0 %v174
    %v224 = vpop.f32.mrb[0].mxu0
    %v225 = vadd.f32 %v141, %v224
    %v226 = vpop.f32.mrb[0].mxu0
    %v227 = vpop.f32.mrb[0].mxu0
    %v228 = vadd.f32 %v141, %v227
    %v229 = vpop.f32.mrb[0].mxu0
    %230 = vmatprep.mubr.bf16.mxu0 0
    %231 = vmatmul.mubr.bf16.gmra.mrb[0].mxu0 %v177
    %v232 = vpop.f32.mrb[0].mxu0
    %v233 = vadd.f32 %v141, %v232
    %v234 = vpop.f32.mrb[0].mxu0
    %v235 = vpop.f32.mrb[0].mxu0
    %v236 = vadd.f32 %v141, %v235
    %v237 = vpop.f32.mrb[0].mxu0
    %238 = vmatprep.mubr.bf16.mxu0 0
    %239 = vmatmul.mubr.bf16.gmra.mrb[0].mxu0 %v180
    %v240 = vpop.f32.mrb[0].mxu0
    %v241 = vadd.f32 %v141, %v240
    %v242 = vpop.f32.mrb[0].mxu0
    %v243 = vpop.f32.mrb[0].mxu0
    %v244 = vadd.f32 %v141, %v243
    %v245 = vpop.f32.mrb[0].mxu0
    %246 = vdwg.mxu0
    %247 = vst [vmem:[#allocation3] sm:$0xff] %v217
    %248 = vst [vmem:[#allocation3 + $0x8] sm:$0xff] %v220
    %249 = vst [vmem:[#allocation3 + $0x10] sm:$0xff] %v225
    %250 = vst [vmem:[#allocation3 + $0x18] sm:$0xff] %v228
    %251 = vst [vmem:[#allocation3 + $0x20] sm:$0xff] %v233
    %252 = vst [vmem:[#allocation3 + $0x28] sm:$0xff] %v236
    %253 = vst [vmem:[#allocation3 + $0x30] sm:$0xff] %v241
    %254 = vst [vmem:[#allocation3 + $0x38] sm:$0xff] %v244
    %v255 = vld [vmem:[#allocation3] sm:$0xff]
    %v260 = vunpack.c.l.b16 %v124
    %v261 = vunpack.c.l.b16 %v125
    %v262 = vunpack.c.l.b16 %v126
    %v263 = vunpack.c.l.b16 %v127
    %v264 = vpack.c.b16 %v261, %v260
    %v265 = vpack.c.b16 %v263, %v262
    %vm268 = vcmask 261120
    %v270 = vsel %vm268, 0, 0
    %272 = vmatprep.subr.bf16.mxu0 0
    %273 = vmatpush1.bf16.msra.mxu0 %v264
    %274 = vmatprep.subr.bf16.mxu0 0
    %275 = vmatpush1.bf16.msra.mxu0 %v265
    %276 = vmatprep.subr.bf16.mxu0 0
    %277 = vmatpush1.bf16.msra.mxu0 0
    %278 = vmatprep.subr.bf16.mxu0 0
    %279 = vmatpush1.bf16.msra.mxu0 0
    %280 = vmatprep.subr.bf16.mxu0 0
    %281 = vmatpush1.bf16.msra.mxu0 0
    %282 = vmatprep.subr.bf16.mxu0 0
    %283 = vmatpush1.bf16.msra.mxu0 0
    %284 = vmatprep.subr.bf16.mxu0 0
    %285 = vmatpush1.bf16.msra.mxu0 0
    %286 = vmatprep.subr.bf16.mxu0 0
    %287 = vmatpush1.bf16.msra.mxu0 0
    %288 = vmatprep.subr.bf16.mxu0 0
    %289 = vmatpush1.bf16.msra.mxu0 0
    %290 = vmatprep.subr.bf16.mxu0 0
    %291 = vmatpush1.bf16.msra.mxu0 0
    %292 = vmatprep.subr.bf16.mxu0 0
    %293 = vmatpush1.bf16.msra.mxu0 0
    %294 = vmatprep.subr.bf16.mxu0 0
    %295 = vmatpush1.bf16.msra.mxu0 0
    %296 = vmatprep.subr.bf16.mxu0 0
    %297 = vmatpush1.bf16.msra.mxu0 0
    %298 = vmatprep.subr.bf16.mxu0 0
    %299 = vmatpush1.bf16.msra.mxu0 0
    %300 = vmatprep.subr.bf16.mxu0 0
    %301 = vmatpush1.bf16.msra.mxu0 0
    %302 = vmatprep.subr.bf16.mxu0 0
    %303 = vmatpush1.bf16.msra.mxu0 0
    %304 = vmatprep.mubr.bf16.mxu0 0
    %305 = vmatmul.mubr.bf16.gmra.mrb[0].mxu0 %v270
    %v306 = vpop.f32.mrb[0].mxu0
    %v307 = vadd.f32 0.0, %v306
    %v308 = vpop.f32.mrb[0].mxu0
    %v309 = vpop.f32.mrb[0].mxu0
    %v310 = vpop.f32.mrb[0].mxu0
    %311 = vdwg.mxu0
    %v312 = vadd.f32 %v255, %v307
    %v313 = vxor.u32 %v312, 2147483648
    %v314 = vmul.f32 %v313, 1.442695
    %v315 = vpow.pop %v314
    %v316 = vadd.f32 %v315, 1.0
    %v317 = vrcp.pop %v316
    %v318 = vmul.f32 1.0, %v317
    %v319 = vtanh.pop %v312
    %v320 = vmul.f32 %v318, 0.0
    %322 = vrot.lane.b32.xlu0 %v319, 64
    %v323 = vpop.permute.xlu0 %322
    %v325 = vmul.f32 %v318, %v323
    %327 = vrot.lane.b32.xlu0 %v325, 32
    %v328 = vpop.permute.xlu0 %327
    %v330 = vadd.f32 %v320, %v328
    %v331 = vtanh.pop %v330
    %333 = vrot.lane.b32.xlu0 %v331, 64
    %v334 = vpop.permute.xlu0 %333
    %v336 = vmul.f32 %v318, %v334
    %338 = vrot.lane.b32.xlu0 %v336, 32
    %v339 = vpop.permute.xlu0 %338
    %341 = vst.msk [vmem:[#allocation2] sm:$0xff] %vm268, %v339
    %s342 = scalar_lea.vmem [#allocation3], 8
    %v343 = vld [vmem:[%s342] sm:$0xff]
    %v344 = vpack.c.bf16 %v336, %v336
    %346 = vrot.lane.b32.xlu0 %v344, 32
    %v347 = vpop.permute.xlu0 %346
    %v349 = vsel %vm268, %v347, 0
    %351 = vmatprep.subr.bf16.mxu0 0
    %352 = vmatpush1.bf16.msra.mxu0 %v264
    %353 = vmatprep.subr.bf16.mxu0 0
    %354 = vmatpush1.bf16.msra.mxu0 %v265
    %355 = vmatprep.subr.bf16.mxu0 0
    %356 = vmatpush1.bf16.msra.mxu0 0
    %357 = vmatprep.subr.bf16.mxu0 0
    %358 = vmatpush1.bf16.msra.mxu0 0
    %359 = vmatprep.subr.bf16.mxu0 0
    %360 = vmatpush1.bf16.msra.mxu0 0
    %361 = vmatprep.subr.bf16.mxu0 0
    %362 = vmatpush1.bf16.msra.mxu0 0
    %363 = vmatprep.subr.bf16.mxu0 0
    %364 = vmatpush1.bf16.msra.mxu0 0
    %365 = vmatprep.subr.bf16.mxu0 0
    %366 = vmatpush1.bf16.msra.mxu0 0
    %367 = vmatprep.subr.bf16.mxu0 0
    %368 = vmatpush1.bf16.msra.mxu0 0
    %369 = vmatprep.subr.bf16.mxu0 0
    %370 = vmatpush1.bf16.msra.mxu0 0
    %371 = vmatprep.subr.bf16.mxu0 0
    %372 = vmatpush1.bf16.msra.mxu0 0
    %373 = vmatprep.subr.bf16.mxu0 0
    %374 = vmatpush1.bf16.msra.mxu0 0
    %375 = vmatprep.subr.bf16.mxu0 0
    %376 = vmatpush1.bf16.msra.mxu0 0
    %377 = vmatprep.subr.bf16.mxu0 0
    %378 = vmatpush1.bf16.msra.mxu0 0
    %379 = vmatprep.subr.bf16.mxu0 0
    %380 = vmatpush1.bf16.msra.mxu0 0
    %381 = vmatprep.subr.bf16.mxu0 0
    %382 = vmatpush1.bf16.msra.mxu0 0
    %383 = vmatprep.mubr.bf16.mxu0 0
    %384 = vmatmul.mubr.bf16.gmra.mrb[0].mxu0 %v349
    %v385 = vpop.f32.mrb[0].mxu0
    %v386 = vadd.f32 0.0, %v385
    %v387 = vpop.f32.mrb[0].mxu0
    %v388 = vpop.f32.mrb[0].mxu0
    %v389 = vpop.f32.mrb[0].mxu0
    %390 = vdwg.mxu0
    %v391 = vadd.f32 %v343, %v386
    %v392 = vxor.u32 %v391, 2147483648
    %v393 = vmul.f32 %v392, 1.442695
    %v394 = vpow.pop %v393
    %v395 = vadd.f32 %v394, 1.0
    %v396 = vrcp.pop %v395
    %v397 = vmul.f32 1.0, %v396
    %v398 = vtanh.pop %v391
    %v399 = vmul.f32 %v397, %v330
    %401 = vrot.lane.b32.xlu0 %v398, 64
    %v402 = vpop.permute.xlu0 %401
    %v404 = vmul.f32 %v397, %v402
    %406 = vrot.lane.b32.xlu0 %v404, 32
    %v407 = vpop.permute.xlu0 %406
    %v409 = vadd.f32 %v399, %v407
    %v410 = vtanh.pop %v409
    %412 = vrot.lane.b32.xlu0 %v410, 64
    %v413 = vpop.permute.xlu0 %412
    %v415 = vmul.f32 %v397, %v413
    %417 = vrot.lane.b32.xlu0 %v415, 32
    %v418 = vpop.permute.xlu0 %417
    %s420 = scalar_lea.vmem [#allocation2], 8
    %421 = vst.msk [vmem:[%s420] sm:$0xff] %vm268, %v418
    %s422 = scalar_lea.vmem [#allocation3], 16
    %v423 = vld [vmem:[%s422] sm:$0xff]
    %v424 = vpack.c.bf16 %v415, %v415
    %426 = vrot.lane.b32.xlu0 %v424, 32
    %v427 = vpop.permute.xlu0 %426
    %v429 = vsel %vm268, %v427, 0
    %431 = vmatprep.subr.bf16.mxu0 0
    %432 = vmatpush1.bf16.msra.mxu0 %v264
    %433 = vmatprep.subr.bf16.mxu0 0
    %434 = vmatpush1.bf16.msra.mxu0 %v265
    %435 = vmatprep.subr.bf16.mxu0 0
    %436 = vmatpush1.bf16.msra.mxu0 0
    %437 = vmatprep.subr.bf16.mxu0 0
    %438 = vmatpush1.bf16.msra.mxu0 0
    %439 = vmatprep.subr.bf16.mxu0 0
    %440 = vmatpush1.bf16.msra.mxu0 0
    %441 = vmatprep.subr.bf16.mxu0 0
    %442 = vmatpush1.bf16.msra.mxu0 0
    %443 = vmatprep.subr.bf16.mxu0 0
    %444 = vmatpush1.bf16.msra.mxu0 0
    %445 = vmatprep.subr.bf16.mxu0 0
    %446 = vmatpush1.bf16.msra.mxu0 0
    %447 = vmatprep.subr.bf16.mxu0 0
    %448 = vmatpush1.bf16.msra.mxu0 0
    %449 = vmatprep.subr.bf16.mxu0 0
    %450 = vmatpush1.bf16.msra.mxu0 0
    %451 = vmatprep.subr.bf16.mxu0 0
    %452 = vmatpush1.bf16.msra.mxu0 0
    %453 = vmatprep.subr.bf16.mxu0 0
    %454 = vmatpush1.bf16.msra.mxu0 0
    %455 = vmatprep.subr.bf16.mxu0 0
    %456 = vmatpush1.bf16.msra.mxu0 0
    %457 = vmatprep.subr.bf16.mxu0 0
    %458 = vmatpush1.bf16.msra.mxu0 0
    %459 = vmatprep.subr.bf16.mxu0 0
    %460 = vmatpush1.bf16.msra.mxu0 0
    %461 = vmatprep.subr.bf16.mxu0 0
    %462 = vmatpush1.bf16.msra.mxu0 0
    %463 = vmatprep.mubr.bf16.mxu0 0
    %464 = vmatmul.mubr.bf16.gmra.mrb[0].mxu0 %v429
    %v465 = vpop.f32.mrb[0].mxu0
    %v466 = vadd.f32 0.0, %v465
    %v467 = vpop.f32.mrb[0].mxu0
    %v468 = vpop.f32.mrb[0].mxu0
    %v469 = vpop.f32.mrb[0].mxu0
    %470 = vdwg.mxu0
    %v471 = vadd.f32 %v423, %v466
    %v472 = vxor.u32 %v471, 2147483648
    %v473 = vmul.f32 %v472, 1.442695
    %v474 = vpow.pop %v473
    %v475 = vadd.f32 %v474, 1.0
    %v476 = vrcp.pop %v475
    %v477 = vmul.f32 1.0, %v476
    %v478 = vtanh.pop %v471
    %v479 = vmul.f32 %v477, %v409
    %481 = vrot.lane.b32.xlu0 %v478, 64
    %v482 = vpop.permute.xlu0 %481
    %v484 = vmul.f32 %v477, %v482
    %486 = vrot.lane.b32.xlu0 %v484, 32
    %v487 = vpop.permute.xlu0 %486
    %v489 = vadd.f32 %v479, %v487
    %v490 = vtanh.pop %v489
    %492 = vrot.lane.b32.xlu0 %v490, 64
    %v493 = vpop.permute.xlu0 %492
    %v495 = vmul.f32 %v477, %v493
    %497 = vrot.lane.b32.xlu0 %v495, 32
    %v498 = vpop.permute.xlu0 %497
    %s500 = scalar_lea.vmem [#allocation2], 16
    %501 = vst.msk [vmem:[%s500] sm:$0xff] %vm268, %v498
    %s502 = scalar_lea.vmem [#allocation3], 24
    %v503 = vld [vmem:[%s502] sm:$0xff]
    %v504 = vpack.c.bf16 %v495, %v495
    %506 = vrot.lane.b32.xlu0 %v504, 32
    %v507 = vpop.permute.xlu0 %506
    %v509 = vsel %vm268, %v507, 0
    %511 = vmatprep.subr.bf16.mxu0 0
    %512 = vmatpush1.bf16.msra.mxu0 %v264
    %513 = vmatprep.subr.bf16.mxu0 0
    %514 = vmatpush1.bf16.msra.mxu0 %v265
    %515 = vmatprep.subr.bf16.mxu0 0
    %516 = vmatpush1.bf16.msra.mxu0 0
    %517 = vmatprep.subr.bf16.mxu0 0
    %518 = vmatpush1.bf16.msra.mxu0 0
    %519 = vmatprep.subr.bf16.mxu0 0
    %520 = vmatpush1.bf16.msra.mxu0 0
    %521 = vmatprep.subr.bf16.mxu0 0
    %522 = vmatpush1.bf16.msra.mxu0 0
    %523 = vmatprep.subr.bf16.mxu0 0
    %524 = vmatpush1.bf16.msra.mxu0 0
    %525 = vmatprep.subr.bf16.mxu0 0
    %526 = vmatpush1.bf16.msra.mxu0 0
    %527 = vmatprep.subr.bf16.mxu0 0
    %528 = vmatpush1.bf16.msra.mxu0 0
    %529 = vmatprep.subr.bf16.mxu0 0
    %530 = vmatpush1.bf16.msra.mxu0 0
    %531 = vmatprep.subr.bf16.mxu0 0
    %532 = vmatpush1.bf16.msra.mxu0 0
    %533 = vmatprep.subr.bf16.mxu0 0
    %534 = vmatpush1.bf16.msra.mxu0 0
    %535 = vmatprep.subr.bf16.mxu0 0
    %536 = vmatpush1.bf16.msra.mxu0 0
    %537 = vmatprep.subr.bf16.mxu0 0
    %538 = vmatpush1.bf16.msra.mxu0 0
    %539 = vmatprep.subr.bf16.mxu0 0
    %540 = vmatpush1.bf16.msra.mxu0 0
    %541 = vmatprep.subr.bf16.mxu0 0
    %542 = vmatpush1.bf16.msra.mxu0 0
    %543 = vmatprep.mubr.bf16.mxu0 0
    %544 = vmatmul.mubr.bf16.gmra.mrb[0].mxu0 %v509
    %v545 = vpop.f32.mrb[0].mxu0
    %v546 = vadd.f32 0.0, %v545
    %v547 = vpop.f32.mrb[0].mxu0
    %v548 = vpop.f32.mrb[0].mxu0
    %v549 = vpop.f32.mrb[0].mxu0
    %550 = vdwg.mxu0
    %v551 = vadd.f32 %v503, %v546
    %v552 = vxor.u32 %v551, 2147483648
    %v553 = vmul.f32 %v552, 1.442695
    %v554 = vpow.pop %v553
    %v555 = vadd.f32 %v554, 1.0
    %v556 = vrcp.pop %v555
    %v557 = vmul.f32 1.0, %v556
    %v558 = vtanh.pop %v551
    %v559 = vmul.f32 %v557, %v489
    %561 = vrot.lane.b32.xlu0 %v558, 64
    %v562 = vpop.permute.xlu0 %561
    %v564 = vmul.f32 %v557, %v562
    %566 = vrot.lane.b32.xlu0 %v564, 32
    %v567 = vpop.permute.xlu0 %566
    %v569 = vadd.f32 %v559, %v567
    %v570 = vtanh.pop %v569
    %572 = vrot.lane.b32.xlu0 %v570, 64
    %v573 = vpop.permute.xlu0 %572
    %v575 = vmul.f32 %v557, %v573
    %577 = vrot.lane.b32.xlu0 %v575, 32
    %v578 = vpop.permute.xlu0 %577
    %s580 = scalar_lea.vmem [#allocation2], 24
    %581 = vst.msk [vmem:[%s580] sm:$0xff] %vm268, %v578
    %s582 = scalar_lea.vmem [#allocation3], 32
    %v583 = vld [vmem:[%s582] sm:$0xff]
    %v584 = vpack.c.bf16 %v575, %v575
    %586 = vrot.lane.b32.xlu0 %v584, 32
    %v587 = vpop.permute.xlu0 %586
    %v589 = vsel %vm268, %v587, 0
    %591 = vmatprep.subr.bf16.mxu0 0
    %592 = vmatpush1.bf16.msra.mxu0 %v264
    %593 = vmatprep.subr.bf16.mxu0 0
    %594 = vmatpush1.bf16.msra.mxu0 %v265
    %595 = vmatprep.subr.bf16.mxu0 0
    %596 = vmatpush1.bf16.msra.mxu0 0
    %597 = vmatprep.subr.bf16.mxu0 0
    %598 = vmatpush1.bf16.msra.mxu0 0
    %599 = vmatprep.subr.bf16.mxu0 0
    %600 = vmatpush1.bf16.msra.mxu0 0
    %601 = vmatprep.subr.bf16.mxu0 0
    %602 = vmatpush1.bf16.msra.mxu0 0
    %603 = vmatprep.subr.bf16.mxu0 0
    %604 = vmatpush1.bf16.msra.mxu0 0
    %605 = vmatprep.subr.bf16.mxu0 0
    %606 = vmatpush1.bf16.msra.mxu0 0
    %607 = vmatprep.subr.bf16.mxu0 0
    %608 = vmatpush1.bf16.msra.mxu0 0
    %609 = vmatprep.subr.bf16.mxu0 0
    %610 = vmatpush1.bf16.msra.mxu0 0
    %611 = vmatprep.subr.bf16.mxu0 0
    %612 = vmatpush1.bf16.msra.mxu0 0
    %613 = vmatprep.subr.bf16.mxu0 0
    %614 = vmatpush1.bf16.msra.mxu0 0
    %615 = vmatprep.subr.bf16.mxu0 0
    %616 = vmatpush1.bf16.msra.mxu0 0
    %617 = vmatprep.subr.bf16.mxu0 0
    %618 = vmatpush1.bf16.msra.mxu0 0
    %619 = vmatprep.subr.bf16.mxu0 0
    %620 = vmatpush1.bf16.msra.mxu0 0
    %621 = vmatprep.subr.bf16.mxu0 0
    %622 = vmatpush1.bf16.msra.mxu0 0
    %623 = vmatprep.mubr.bf16.mxu0 0
    %624 = vmatmul.mubr.bf16.gmra.mrb[0].mxu0 %v589
    %v625 = vpop.f32.mrb[0].mxu0
    %v626 = vadd.f32 0.0, %v625
    %v627 = vpop.f32.mrb[0].mxu0
    %v628 = vpop.f32.mrb[0].mxu0
    %v629 = vpop.f32.mrb[0].mxu0
    %630 = vdwg.mxu0
    %v631 = vadd.f32 %v583, %v626
    %v632 = vxor.u32 %v631, 2147483648
    %v633 = vmul.f32 %v632, 1.442695
    %v634 = vpow.pop %v633
    %v635 = vadd.f32 %v634, 1.0
    %v636 = vrcp.pop %v635
    %v637 = vmul.f32 1.0, %v636
    %v638 = vtanh.pop %v631
    %v639 = vmul.f32 %v637, %v569
    %641 = vrot.lane.b32.xlu0 %v638, 64
    %v642 = vpop.permute.xlu0 %641
    %v644 = vmul.f32 %v637, %v642
    %646 = vrot.lane.b32.xlu0 %v644, 32
    %v647 = vpop.permute.xlu0 %646
    %v649 = vadd.f32 %v639, %v647
    %v650 = vtanh.pop %v649
    %652 = vrot.lane.b32.xlu0 %v650, 64
    %v653 = vpop.permute.xlu0 %652
    %v655 = vmul.f32 %v637, %v653
    %657 = vrot.lane.b32.xlu0 %v655, 32
    %v658 = vpop.permute.xlu0 %657
    %s660 = scalar_lea.vmem [#allocation2], 32
    %661 = vst.msk [vmem:[%s660] sm:$0xff] %vm268, %v658
    %s662 = scalar_lea.vmem [#allocation3], 40
    %v663 = vld [vmem:[%s662] sm:$0xff]
    %v664 = vpack.c.bf16 %v655, %v655
    %666 = vrot.lane.b32.xlu0 %v664, 32
    %v667 = vpop.permute.xlu0 %666
    %v669 = vsel %vm268, %v667, 0
    %671 = vmatprep.subr.bf16.mxu0 0
    %672 = vmatpush1.bf16.msra.mxu0 %v264
    %673 = vmatprep.subr.bf16.mxu0 0
    %674 = vmatpush1.bf16.msra.mxu0 %v265
    %675 = vmatprep.subr.bf16.mxu0 0
    %676 = vmatpush1.bf16.msra.mxu0 0
    %677 = vmatprep.subr.bf16.mxu0 0
    %678 = vmatpush1.bf16.msra.mxu0 0
    %679 = vmatprep.subr.bf16.mxu0 0
    %680 = vmatpush1.bf16.msra.mxu0 0
    %681 = vmatprep.subr.bf16.mxu0 0
    %682 = vmatpush1.bf16.msra.mxu0 0
    %683 = vmatprep.subr.bf16.mxu0 0
    %684 = vmatpush1.bf16.msra.mxu0 0
    %685 = vmatprep.subr.bf16.mxu0 0
    %686 = vmatpush1.bf16.msra.mxu0 0
    %687 = vmatprep.subr.bf16.mxu0 0
    %688 = vmatpush1.bf16.msra.mxu0 0
    %689 = vmatprep.subr.bf16.mxu0 0
    %690 = vmatpush1.bf16.msra.mxu0 0
    %691 = vmatprep.subr.bf16.mxu0 0
    %692 = vmatpush1.bf16.msra.mxu0 0
    %693 = vmatprep.subr.bf16.mxu0 0
    %694 = vmatpush1.bf16.msra.mxu0 0
    %695 = vmatprep.subr.bf16.mxu0 0
    %696 = vmatpush1.bf16.msra.mxu0 0
    %697 = vmatprep.subr.bf16.mxu0 0
    %698 = vmatpush1.bf16.msra.mxu0 0
    %699 = vmatprep.subr.bf16.mxu0 0
    %700 = vmatpush1.bf16.msra.mxu0 0
    %701 = vmatprep.subr.bf16.mxu0 0
    %702 = vmatpush1.bf16.msra.mxu0 0
    %703 = vmatprep.mubr.bf16.mxu0 0
    %704 = vmatmul.mubr.bf16.gmra.mrb[0].mxu0 %v669
    %v705 = vpop.f32.mrb[0].mxu0
    %v706 = vadd.f32 0.0, %v705
    %v707 = vpop.f32.mrb[0].mxu0
    %v708 = vpop.f32.mrb[0].mxu0
    %v709 = vpop.f32.mrb[0].mxu0
    %710 = vdwg.mxu0
    %v711 = vadd.f32 %v663, %v706
    %v712 = vxor.u32 %v711, 2147483648
    %v713 = vmul.f32 %v712, 1.442695
    %v714 = vpow.pop %v713
    %v715 = vadd.f32 %v714, 1.0
    %v716 = vrcp.pop %v715
    %v717 = vmul.f32 1.0, %v716
    %v718 = vtanh.pop %v711
    %v719 = vmul.f32 %v717, %v649
    %721 = vrot.lane.b32.xlu0 %v718, 64
    %v722 = vpop.permute.xlu0 %721
    %v724 = vmul.f32 %v717, %v722
    %726 = vrot.lane.b32.xlu0 %v724, 32
    %v727 = vpop.permute.xlu0 %726
    %v729 = vadd.f32 %v719, %v727
    %v730 = vtanh.pop %v729
    %732 = vrot.lane.b32.xlu0 %v730, 64
    %v733 = vpop.permute.xlu0 %732
    %v735 = vmul.f32 %v717, %v733
    %737 = vrot.lane.b32.xlu0 %v735, 32
    %v738 = vpop.permute.xlu0 %737
    %s740 = scalar_lea.vmem [#allocation2], 40
    %741 = vst.msk [vmem:[%s740] sm:$0xff] %vm268, %v738
    %s742 = scalar_lea.vmem [#allocation3], 48
    %v743 = vld [vmem:[%s742] sm:$0xff]
    %v744 = vpack.c.bf16 %v735, %v735
    %746 = vrot.lane.b32.xlu0 %v744, 32
    %v747 = vpop.permute.xlu0 %746
    %v749 = vsel %vm268, %v747, 0
    %751 = vmatprep.subr.bf16.mxu0 0
    %752 = vmatpush1.bf16.msra.mxu0 %v264
    %753 = vmatprep.subr.bf16.mxu0 0
    %754 = vmatpush1.bf16.msra.mxu0 %v265
    %755 = vmatprep.subr.bf16.mxu0 0
    %756 = vmatpush1.bf16.msra.mxu0 0
    %757 = vmatprep.subr.bf16.mxu0 0
    %758 = vmatpush1.bf16.msra.mxu0 0
    %759 = vmatprep.subr.bf16.mxu0 0
    %760 = vmatpush1.bf16.msra.mxu0 0
    %761 = vmatprep.subr.bf16.mxu0 0
    %762 = vmatpush1.bf16.msra.mxu0 0
    %763 = vmatprep.subr.bf16.mxu0 0
    %764 = vmatpush1.bf16.msra.mxu0 0
    %765 = vmatprep.subr.bf16.mxu0 0
    %766 = vmatpush1.bf16.msra.mxu0 0
    %767 = vmatprep.subr.bf16.mxu0 0
    %768 = vmatpush1.bf16.msra.mxu0 0
    %769 = vmatprep.subr.bf16.mxu0 0
    %770 = vmatpush1.bf16.msra.mxu0 0
    %771 = vmatprep.subr.bf16.mxu0 0
    %772 = vmatpush1.bf16.msra.mxu0 0
    %773 = vmatprep.subr.bf16.mxu0 0
    %774 = vmatpush1.bf16.msra.mxu0 0
    %775 = vmatprep.subr.bf16.mxu0 0
    %776 = vmatpush1.bf16.msra.mxu0 0
    %777 = vmatprep.subr.bf16.mxu0 0
    %778 = vmatpush1.bf16.msra.mxu0 0
    %779 = vmatprep.subr.bf16.mxu0 0
    %780 = vmatpush1.bf16.msra.mxu0 0
    %781 = vmatprep.subr.bf16.mxu0 0
    %782 = vmatpush1.bf16.msra.mxu0 0
    %783 = vmatprep.mubr.bf16.mxu0 0
    %784 = vmatmul.mubr.bf16.gmra.mrb[0].mxu0 %v749
    %v785 = vpop.f32.mrb[0].mxu0
    %v786 = vadd.f32 0.0, %v785
    %v787 = vpop.f32.mrb[0].mxu0
    %v788 = vpop.f32.mrb[0].mxu0
    %v789 = vpop.f32.mrb[0].mxu0
    %790 = vdwg.mxu0
    %v791 = vadd.f32 %v743, %v786
    %v792 = vxor.u32 %v791, 2147483648
    %v793 = vmul.f32 %v792, 1.442695
    %v794 = vpow.pop %v793
    %v795 = vadd.f32 %v794, 1.0
    %v796 = vrcp.pop %v795
    %v797 = vmul.f32 1.0, %v796
    %v798 = vtanh.pop %v791
    %v799 = vmul.f32 %v797, %v729
    %801 = vrot.lane.b32.xlu0 %v798, 64
    %v802 = vpop.permute.xlu0 %801
    %v804 = vmul.f32 %v797, %v802
    %806 = vrot.lane.b32.xlu0 %v804, 32
    %v807 = vpop.permute.xlu0 %806
    %v809 = vadd.f32 %v799, %v807
    %v810 = vtanh.pop %v809
    %812 = vrot.lane.b32.xlu0 %v810, 64
    %v813 = vpop.permute.xlu0 %812
    %v815 = vmul.f32 %v797, %v813
    %817 = vrot.lane.b32.xlu0 %v815, 32
    %v818 = vpop.permute.xlu0 %817
    %s820 = scalar_lea.vmem [#allocation2], 48
    %821 = vst.msk [vmem:[%s820] sm:$0xff] %vm268, %v818
    %s822 = scalar_lea.vmem [#allocation3], 56
    %v823 = vld [vmem:[%s822] sm:$0xff]
    %v824 = vpack.c.bf16 %v815, %v815
    %826 = vrot.lane.b32.xlu0 %v824, 32
    %v827 = vpop.permute.xlu0 %826
    %v829 = vsel %vm268, %v827, 0
    %831 = vmatprep.subr.bf16.mxu0 0
    %832 = vmatpush1.bf16.msra.mxu0 %v264
    %833 = vmatprep.subr.bf16.mxu0 0
    %834 = vmatpush1.bf16.msra.mxu0 %v265
    %835 = vmatprep.subr.bf16.mxu0 0
    %836 = vmatpush1.bf16.msra.mxu0 0
    %837 = vmatprep.subr.bf16.mxu0 0
    %838 = vmatpush1.bf16.msra.mxu0 0
    %839 = vmatprep.subr.bf16.mxu0 0
    %840 = vmatpush1.bf16.msra.mxu0 0
    %841 = vmatprep.subr.bf16.mxu0 0
    %842 = vmatpush1.bf16.msra.mxu0 0
    %843 = vmatprep.subr.bf16.mxu0 0
    %844 = vmatpush1.bf16.msra.mxu0 0
    %845 = vmatprep.subr.bf16.mxu0 0
    %846 = vmatpush1.bf16.msra.mxu0 0
    %847 = vmatprep.subr.bf16.mxu0 0
    %848 = vmatpush1.bf16.msra.mxu0 0
    %849 = vmatprep.subr.bf16.mxu0 0
    %850 = vmatpush1.bf16.msra.mxu0 0
    %851 = vmatprep.subr.bf16.mxu0 0
    %852 = vmatpush1.bf16.msra.mxu0 0
    %853 = vmatprep.subr.bf16.mxu0 0
    %854 = vmatpush1.bf16.msra.mxu0 0
    %855 = vmatprep.subr.bf16.mxu0 0
    %856 = vmatpush1.bf16.msra.mxu0 0
    %857 = vmatprep.subr.bf16.mxu0 0
    %858 = vmatpush1.bf16.msra.mxu0 0
    %859 = vmatprep.subr.bf16.mxu0 0
    %860 = vmatpush1.bf16.msra.mxu0 0
    %861 = vmatprep.subr.bf16.mxu0 0
    %862 = vmatpush1.bf16.msra.mxu0 0
    %863 = vmatprep.mubr.bf16.mxu0 0
    %864 = vmatmul.mubr.bf16.gmra.mrb[0].mxu0 %v829
    %v865 = vpop.f32.mrb[0].mxu0
    %v866 = vadd.f32 0.0, %v865
    %v867 = vpop.f32.mrb[0].mxu0
    %v868 = vpop.f32.mrb[0].mxu0
    %v869 = vpop.f32.mrb[0].mxu0
    %870 = vdwg.mxu0
    %v871 = vadd.f32 %v823, %v866
    %v872 = vxor.u32 %v871, 2147483648
    %v873 = vmul.f32 %v872, 1.442695
    %v874 = vpow.pop %v873
    %v875 = vadd.f32 %v874, 1.0
    %v876 = vrcp.pop %v875
    %v877 = vmul.f32 1.0, %v876
    %v878 = vtanh.pop %v871
    %v879 = vmul.f32 %v877, %v809
    %881 = vrot.lane.b32.xlu0 %v878, 64
    %v882 = vpop.permute.xlu0 %881
    %v884 = vmul.f32 %v877, %v882
    %886 = vrot.lane.b32.xlu0 %v884, 32
    %v887 = vpop.permute.xlu0 %886
    %v889 = vadd.f32 %v879, %v887
    %v890 = vtanh.pop %v889
    %892 = vrot.lane.b32.xlu0 %v890, 64
    %v893 = vpop.permute.xlu0 %892
    %v895 = vmul.f32 %v877, %v893
    %897 = vrot.lane.b32.xlu0 %v895, 32
    %v898 = vpop.permute.xlu0 %897
    %s900 = scalar_lea.vmem [#allocation2], 56
    %901 = vst.msk [vmem:[%s900] sm:$0xff] %vm268, %v898
    %902 = vst.msk [vmem:[#allocation16] sm:$0xff] %vm268, %v898
    %904 = vrot.lane.b32.xlu0 %v889, 96
    %v905 = vpop.permute.xlu0 %904
    %907 = vst.msk [vmem:[#allocation17] sm:$0xff] %vm268, %v905
    %v908 = vld [vmem:[#allocation12] sm:$0xf]
    %v909 = vld [vmem:[#allocation12 + $0x4] sm:$0xf]
    %v910 = vld [vmem:[#allocation12 + $0x8] sm:$0xf]
    %v911 = vld [vmem:[#allocation12 + $0xc] sm:$0xf]
    %v912 = vld [vmem:[#allocation13] sm:$0xf]
    %v913 = vld [vmem:[#allocation13 + $0x4] sm:$0xf]
    %v914 = vld [vmem:[#allocation13 + $0x8] sm:$0xf]
    %v915 = vld [vmem:[#allocation13 + $0xc] sm:$0xf]
    %v916 = vld [vmem:[#allocation15] sm:$0x1]
    %v917 = vld [vmem:[#allocation2] sm:$0xff]
    %v918 = vld [vmem:[#allocation2 + $0x8] sm:$0xff]
    %v919 = vld [vmem:[#allocation2 + $0x10] sm:$0xff]
    %v920 = vld [vmem:[#allocation2 + $0x18] sm:$0xff]
    %v921 = vld [vmem:[#allocation2 + $0x20] sm:$0xff]
    %v922 = vld [vmem:[#allocation2 + $0x28] sm:$0xff]
    %v923 = vld [vmem:[#allocation2 + $0x30] sm:$0xff]
    %v924 = vld [vmem:[#allocation2 + $0x38] sm:$0xff]
    %v925 = vpack.c.bf16 %v918, %v917
    %v926 = vpack.c.bf16 %v920, %v919
    %v927 = vpack.c.bf16 %v922, %v921
    %v928 = vpack.c.bf16 %v924, %v923
    %v930 = vlaneseq
    %v931 = vshrl.u32 %v930, 7
    %v932 = vsub.s32 0, %v931
    %v933 = vrot.slane %v916, %v932
    %v939 = vunpack.c.l.b16 %v908
    %v940 = vunpack.c.l.b16 %v909
    %v941 = vunpack.c.l.b16 %v910
    %v942 = vunpack.c.l.b16 %v911
    %v943 = vpack.c.b16 %v940, %v939
    %v944 = vpack.c.b16 %v942, %v941
    %v948 = vsel %vm268, %v925, 0
    %v951 = vsel %vm268, %v926, 0
    %v954 = vsel %vm268, %v927, 0
    %v957 = vsel %vm268, %v928, 0
    %959 = vmatprep.subr.bf16.mxu0 0
    %960 = vmatpush1.bf16.msra.mxu0 %v943
    %961 = vmatprep.subr.bf16.mxu0 0
    %962 = vmatpush1.bf16.msra.mxu0 %v944
    %963 = vmatprep.subr.bf16.mxu0 0
    %964 = vmatpush1.bf16.msra.mxu0 0
    %965 = vmatprep.subr.bf16.mxu0 0
    %966 = vmatpush1.bf16.msra.mxu0 0
    %967 = vmatprep.subr.bf16.mxu0 0
    %968 = vmatpush1.bf16.msra.mxu0 0
    %969 = vmatprep.subr.bf16.mxu0 0
    %970 = vmatpush1.bf16.msra.mxu0 0
    %971 = vmatprep.subr.bf16.mxu0 0
    %972 = vmatpush1.bf16.msra.mxu0 0
    %973 = vmatprep.subr.bf16.mxu0 0
    %974 = vmatpush1.bf16.msra.mxu0 0
    %975 = vmatprep.subr.bf16.mxu0 0
    %976 = vmatpush1.bf16.msra.mxu0 0
    %977 = vmatprep.subr.bf16.mxu0 0
    %978 = vmatpush1.bf16.msra.mxu0 0
    %979 = vmatprep.subr.bf16.mxu0 0
    %980 = vmatpush1.bf16.msra.mxu0 0
    %981 = vmatprep.subr.bf16.mxu0 0
    %982 = vmatpush1.bf16.msra.mxu0 0
    %983 = vmatprep.subr.bf16.mxu0 0
    %984 = vmatpush1.bf16.msra.mxu0 0
    %985 = vmatprep.subr.bf16.mxu0 0
    %986 = vmatpush1.bf16.msra.mxu0 0
    %987 = vmatprep.subr.bf16.mxu0 0
    %988 = vmatpush1.bf16.msra.mxu0 0
    %989 = vmatprep.subr.bf16.mxu0 0
    %990 = vmatpush1.bf16.msra.mxu0 0
    %991 = vmatprep.mubr.bf16.mxu0 0
    %992 = vmatmul.mubr.bf16.gmra.mrb[0].mxu0 %v948
    %v993 = vpop.f32.mrb[0].mxu0
    %v994 = vadd.f32 %v933, %v993
    %v995 = vpop.f32.mrb[0].mxu0
    %v996 = vpop.f32.mrb[0].mxu0
    %v997 = vadd.f32 %v933, %v996
    %v998 = vpop.f32.mrb[0].mxu0
    %999 = vmatprep.mubr.bf16.mxu0 0
    %1000 = vmatmul.mubr.bf16.gmra.mrb[0].mxu0 %v951
    %v1001 = vpop.f32.mrb[0].mxu0
    %v1002 = vadd.f32 %v933, %v1001
    %v1003 = vpop.f32.mrb[0].mxu0
    %v1004 = vpop.f32.mrb[0].mxu0
    %v1005 = vadd.f32 %v933, %v1004
    %v1006 = vpop.f32.mrb[0].mxu0
    %1007 = vmatprep.mubr.bf16.mxu0 0
    %1008 = vmatmul.mubr.bf16.gmra.mrb[0].mxu0 %v954
    %v1009 = vpop.f32.mrb[0].mxu0
    %v1010 = vadd.f32 %v933, %v1009
    %v1011 = vpop.f32.mrb[0].mxu0
    %v1012 = vpop.f32.mrb[0].mxu0
    %v1013 = vadd.f32 %v933, %v1012
    %v1014 = vpop.f32.mrb[0].mxu0
    %1015 = vmatprep.mubr.bf16.mxu0 0
    %1016 = vmatmul.mubr.bf16.gmra.mrb[0].mxu0 %v957
    %v1017 = vpop.f32.mrb[0].mxu0
    %v1018 = vadd.f32 %v933, %v1017
    %v1019 = vpop.f32.mrb[0].mxu0
    %v1020 = vpop.f32.mrb[0].mxu0
    %v1021 = vadd.f32 %v933, %v1020
    %v1022 = vpop.f32.mrb[0].mxu0
    %1023 = vdwg.mxu0
    %1024 = vst [vmem:[#allocation3] sm:$0xff] %v994
    %1025 = vst [vmem:[#allocation3 + $0x8] sm:$0xff] %v997
    %1026 = vst [vmem:[#allocation3 + $0x10] sm:$0xff] %v1002
    %1027 = vst [vmem:[#allocation3 + $0x18] sm:$0xff] %v1005
    %1028 = vst [vmem:[#allocation3 + $0x20] sm:$0xff] %v1010
    %1029 = vst [vmem:[#allocation3 + $0x28] sm:$0xff] %v1013
    %1030 = vst [vmem:[#allocation3 + $0x30] sm:$0xff] %v1018
    %1031 = vst [vmem:[#allocation3 + $0x38] sm:$0xff] %v1021
    %v1032 = vld [vmem:[#allocation3] sm:$0xff]
    %v1037 = vunpack.c.l.b16 %v912
    %v1038 = vunpack.c.l.b16 %v913
    %v1039 = vunpack.c.l.b16 %v914
    %v1040 = vunpack.c.l.b16 %v915
    %v1041 = vpack.c.b16 %v1038, %v1037
    %v1042 = vpack.c.b16 %v1040, %v1039
    %1045 = vmatprep.subr.bf16.mxu0 0
    %1046 = vmatpush1.bf16.msra.mxu0 %v1041
    %1047 = vmatprep.subr.bf16.mxu0 0
    %1048 = vmatpush1.bf16.msra.mxu0 %v1042
    %1049 = vmatprep.subr.bf16.mxu0 0
    %1050 = vmatpush1.bf16.msra.mxu0 0
    %1051 = vmatprep.subr.bf16.mxu0 0
    %1052 = vmatpush1.bf16.msra.mxu0 0
    %1053 = vmatprep.subr.bf16.mxu0 0
    %1054 = vmatpush1.bf16.msra.mxu0 0
    %1055 = vmatprep.subr.bf16.mxu0 0
    %1056 = vmatpush1.bf16.msra.mxu0 0
    %1057 = vmatprep.subr.bf16.mxu0 0
    %1058 = vmatpush1.bf16.msra.mxu0 0
    %1059 = vmatprep.subr.bf16.mxu0 0
    %1060 = vmatpush1.bf16.msra.mxu0 0
    %1061 = vmatprep.subr.bf16.mxu0 0
    %1062 = vmatpush1.bf16.msra.mxu0 0
    %1063 = vmatprep.subr.bf16.mxu0 0
    %1064 = vmatpush1.bf16.msra.mxu0 0
    %1065 = vmatprep.subr.bf16.mxu0 0
    %1066 = vmatpush1.bf16.msra.mxu0 0
    %1067 = vmatprep.subr.bf16.mxu0 0
    %1068 = vmatpush1.bf16.msra.mxu0 0
    %1069 = vmatprep.subr.bf16.mxu0 0
    %1070 = vmatpush1.bf16.msra.mxu0 0
    %1071 = vmatprep.subr.bf16.mxu0 0
    %1072 = vmatpush1.bf16.msra.mxu0 0
    %1073 = vmatprep.subr.bf16.mxu0 0
    %1074 = vmatpush1.bf16.msra.mxu0 0
    %1075 = vmatprep.subr.bf16.mxu0 0
    %1076 = vmatpush1.bf16.msra.mxu0 0
    %1077 = vmatprep.mubr.bf16.mxu0 0
    %1078 = vmatmul.mubr.bf16.gmra.mrb[0].mxu0 %v270
    %v1079 = vpop.f32.mrb[0].mxu0
    %v1080 = vadd.f32 0.0, %v1079
    %v1081 = vpop.f32.mrb[0].mxu0
    %v1082 = vpop.f32.mrb[0].mxu0
    %v1083 = vpop.f32.mrb[0].mxu0
    %1084 = vdwg.mxu0
    %v1085 = vadd.f32 %v1032, %v1080
    %v1086 = vxor.u32 %v1085, 2147483648
    %v1087 = vmul.f32 %v1086, 1.442695
    %v1088 = vpow.pop %v1087
    %v1089 = vadd.f32 %v1088, 1.0
    %v1090 = vrcp.pop %v1089
    %v1091 = vmul.f32 1.0, %v1090
    %v1092 = vtanh.pop %v1085
    %v1093 = vmul.f32 %v1091, 0.0
    %1095 = vrot.lane.b32.xlu0 %v1092, 64
    %v1096 = vpop.permute.xlu0 %1095
    %v1098 = vmul.f32 %v1091, %v1096
    %1100 = vrot.lane.b32.xlu0 %v1098, 32
    %v1101 = vpop.permute.xlu0 %1100
    %v1103 = vadd.f32 %v1093, %v1101
    %v1104 = vtanh.pop %v1103
    %1106 = vrot.lane.b32.xlu0 %v1104, 64
    %v1107 = vpop.permute.xlu0 %1106
    %v1109 = vmul.f32 %v1091, %v1107
    %v1110 = vld [vmem:[%s342] sm:$0xff]
    %v1111 = vpack.c.bf16 %v1109, %v1109
    %1113 = vrot.lane.b32.xlu0 %v1111, 32
    %v1114 = vpop.permute.xlu0 %1113
    %v1116 = vsel %vm268, %v1114, 0
    %1118 = vmatprep.subr.bf16.mxu0 0
    %1119 = vmatpush1.bf16.msra.mxu0 %v1041
    %1120 = vmatprep.subr.bf16.mxu0 0
    %1121 = vmatpush1.bf16.msra.mxu0 %v1042
    %1122 = vmatprep.subr.bf16.mxu0 0
    %1123 = vmatpush1.bf16.msra.mxu0 0
    %1124 = vmatprep.subr.bf16.mxu0 0
    %1125 = vmatpush1.bf16.msra.mxu0 0
    %1126 = vmatprep.subr.bf16.mxu0 0
    %1127 = vmatpush1.bf16.msra.mxu0 0
    %1128 = vmatprep.subr.bf16.mxu0 0
    %1129 = vmatpush1.bf16.msra.mxu0 0
    %1130 = vmatprep.subr.bf16.mxu0 0
    %1131 = vmatpush1.bf16.msra.mxu0 0
    %1132 = vmatprep.subr.bf16.mxu0 0
    %1133 = vmatpush1.bf16.msra.mxu0 0
    %1134 = vmatprep.subr.bf16.mxu0 0
    %1135 = vmatpush1.bf16.msra.mxu0 0
    %1136 = vmatprep.subr.bf16.mxu0 0
    %1137 = vmatpush1.bf16.msra.mxu0 0
    %1138 = vmatprep.subr.bf16.mxu0 0
    %1139 = vmatpush1.bf16.msra.mxu0 0
    %1140 = vmatprep.subr.bf16.mxu0 0
    %1141 = vmatpush1.bf16.msra.mxu0 0
    %1142 = vmatprep.subr.bf16.mxu0 0
    %1143 = vmatpush1.bf16.msra.mxu0 0
    %1144 = vmatprep.subr.bf16.mxu0 0
    %1145 = vmatpush1.bf16.msra.mxu0 0
    %1146 = vmatprep.subr.bf16.mxu0 0
    %1147 = vmatpush1.bf16.msra.mxu0 0
    %1148 = vmatprep.subr.bf16.mxu0 0
    %1149 = vmatpush1.bf16.msra.mxu0 0
    %1150 = vmatprep.mubr.bf16.mxu0 0
    %1151 = vmatmul.mubr.bf16.gmra.mrb[0].mxu0 %v1116
    %v1152 = vpop.f32.mrb[0].mxu0
    %v1153 = vadd.f32 0.0, %v1152
    %v1154 = vpop.f32.mrb[0].mxu0
    %v1155 = vpop.f32.mrb[0].mxu0
    %v1156 = vpop.f32.mrb[0].mxu0
    %1157 = vdwg.mxu0
    %v1158 = vadd.f32 %v1110, %v1153
    %v1159 = vxor.u32 %v1158, 2147483648
    %v1160 = vmul.f32 %v1159, 1.442695
    %v1161 = vpow.pop %v1160
    %v1162 = vadd.f32 %v1161, 1.0
    %v1163 = vrcp.pop %v1162
    %v1164 = vmul.f32 1.0, %v1163
    %v1165 = vtanh.pop %v1158
    %v1166 = vmul.f32 %v1164, %v1103
    %1168 = vrot.lane.b32.xlu0 %v1165, 64
    %v1169 = vpop.permute.xlu0 %1168
    %v1171 = vmul.f32 %v1164, %v1169
    %1173 = vrot.lane.b32.xlu0 %v1171, 32
    %v1174 = vpop.permute.xlu0 %1173
    %v1176 = vadd.f32 %v1166, %v1174
    %v1177 = vtanh.pop %v1176
    %1179 = vrot.lane.b32.xlu0 %v1177, 64
    %v1180 = vpop.permute.xlu0 %1179
    %v1182 = vmul.f32 %v1164, %v1180
    %v1183 = vld [vmem:[%s422] sm:$0xff]
    %v1184 = vpack.c.bf16 %v1182, %v1182
    %1186 = vrot.lane.b32.xlu0 %v1184, 32
    %v1187 = vpop.permute.xlu0 %1186
    %v1189 = vsel %vm268, %v1187, 0
    %1191 = vmatprep.subr.bf16.mxu0 0
    %1192 = vmatpush1.bf16.msra.mxu0 %v1041
    %1193 = vmatprep.subr.bf16.mxu0 0
    %1194 = vmatpush1.bf16.msra.mxu0 %v1042
    %1195 = vmatprep.subr.bf16.mxu0 0
    %1196 = vmatpush1.bf16.msra.mxu0 0
    %1197 = vmatprep.subr.bf16.mxu0 0
    %1198 = vmatpush1.bf16.msra.mxu0 0
    %1199 = vmatprep.subr.bf16.mxu0 0
    %1200 = vmatpush1.bf16.msra.mxu0 0
    %1201 = vmatprep.subr.bf16.mxu0 0
    %1202 = vmatpush1.bf16.msra.mxu0 0
    %1203 = vmatprep.subr.bf16.mxu0 0
    %1204 = vmatpush1.bf16.msra.mxu0 0
    %1205 = vmatprep.subr.bf16.mxu0 0
    %1206 = vmatpush1.bf16.msra.mxu0 0
    %1207 = vmatprep.subr.bf16.mxu0 0
    %1208 = vmatpush1.bf16.msra.mxu0 0
    %1209 = vmatprep.subr.bf16.mxu0 0
    %1210 = vmatpush1.bf16.msra.mxu0 0
    %1211 = vmatprep.subr.bf16.mxu0 0
    %1212 = vmatpush1.bf16.msra.mxu0 0
    %1213 = vmatprep.subr.bf16.mxu0 0
    %1214 = vmatpush1.bf16.msra.mxu0 0
    %1215 = vmatprep.subr.bf16.mxu0 0
    %1216 = vmatpush1.bf16.msra.mxu0 0
    %1217 = vmatprep.subr.bf16.mxu0 0
    %1218 = vmatpush1.bf16.msra.mxu0 0
    %1219 = vmatprep.subr.bf16.mxu0 0
    %1220 = vmatpush1.bf16.msra.mxu0 0
    %1221 = vmatprep.subr.bf16.mxu0 0
    %1222 = vmatpush1.bf16.msra.mxu0 0
    %1223 = vmatprep.mubr.bf16.mxu0 0
    %1224 = vmatmul.mubr.bf16.gmra.mrb[0].mxu0 %v1189
    %v1225 = vpop.f32.mrb[0].mxu0
    %v1226 = vadd.f32 0.0, %v1225
    %v1227 = vpop.f32.mrb[0].mxu0
    %v1228 = vpop.f32.mrb[0].mxu0
    %v1229 = vpop.f32.mrb[0].mxu0
    %1230 = vdwg.mxu0
    %v1231 = vadd.f32 %v1183, %v1226
    %v1232 = vxor.u32 %v1231, 2147483648
    %v1233 = vmul.f32 %v1232, 1.442695
    %v1234 = vpow.pop %v1233
    %v1235 = vadd.f32 %v1234, 1.0
    %v1236 = vrcp.pop %v1235
    %v1237 = vmul.f32 1.0, %v1236
    %v1238 = vtanh.pop %v1231
    %v1239 = vmul.f32 %v1237, %v1176
    %1241 = vrot.lane.b32.xlu0 %v1238, 64
    %v1242 = vpop.permute.xlu0 %1241
    %v1244 = vmul.f32 %v1237, %v1242
    %1246 = vrot.lane.b32.xlu0 %v1244, 32
    %v1247 = vpop.permute.xlu0 %1246
    %v1249 = vadd.f32 %v1239, %v1247
    %v1250 = vtanh.pop %v1249
    %1252 = vrot.lane.b32.xlu0 %v1250, 64
    %v1253 = vpop.permute.xlu0 %1252
    %v1255 = vmul.f32 %v1237, %v1253
    %v1256 = vld [vmem:[%s502] sm:$0xff]
    %v1257 = vpack.c.bf16 %v1255, %v1255
    %1259 = vrot.lane.b32.xlu0 %v1257, 32
    %v1260 = vpop.permute.xlu0 %1259
    %v1262 = vsel %vm268, %v1260, 0
    %1264 = vmatprep.subr.bf16.mxu0 0
    %1265 = vmatpush1.bf16.msra.mxu0 %v1041
    %1266 = vmatprep.subr.bf16.mxu0 0
    %1267 = vmatpush1.bf16.msra.mxu0 %v1042
    %1268 = vmatprep.subr.bf16.mxu0 0
    %1269 = vmatpush1.bf16.msra.mxu0 0
    %1270 = vmatprep.subr.bf16.mxu0 0
    %1271 = vmatpush1.bf16.msra.mxu0 0
    %1272 = vmatprep.subr.bf16.mxu0 0
    %1273 = vmatpush1.bf16.msra.mxu0 0
    %1274 = vmatprep.subr.bf16.mxu0 0
    %1275 = vmatpush1.bf16.msra.mxu0 0
    %1276 = vmatprep.subr.bf16.mxu0 0
    %1277 = vmatpush1.bf16.msra.mxu0 0
    %1278 = vmatprep.subr.bf16.mxu0 0
    %1279 = vmatpush1.bf16.msra.mxu0 0
    %1280 = vmatprep.subr.bf16.mxu0 0
    %1281 = vmatpush1.bf16.msra.mxu0 0
    %1282 = vmatprep.subr.bf16.mxu0 0
    %1283 = vmatpush1.bf16.msra.mxu0 0
    %1284 = vmatprep.subr.bf16.mxu0 0
    %1285 = vmatpush1.bf16.msra.mxu0 0
    %1286 = vmatprep.subr.bf16.mxu0 0
    %1287 = vmatpush1.bf16.msra.mxu0 0
    %1288 = vmatprep.subr.bf16.mxu0 0
    %1289 = vmatpush1.bf16.msra.mxu0 0
    %1290 = vmatprep.subr.bf16.mxu0 0
    %1291 = vmatpush1.bf16.msra.mxu0 0
    %1292 = vmatprep.subr.bf16.mxu0 0
    %1293 = vmatpush1.bf16.msra.mxu0 0
    %1294 = vmatprep.subr.bf16.mxu0 0
    %1295 = vmatpush1.bf16.msra.mxu0 0
    %1296 = vmatprep.mubr.bf16.mxu0 0
    %1297 = vmatmul.mubr.bf16.gmra.mrb[0].mxu0 %v1262
    %v1298 = vpop.f32.mrb[0].mxu0
    %v1299 = vadd.f32 0.0, %v1298
    %v1300 = vpop.f32.mrb[0].mxu0
    %v1301 = vpop.f32.mrb[0].mxu0
    %v1302 = vpop.f32.mrb[0].mxu0
    %1303 = vdwg.mxu0
    %v1304 = vadd.f32 %v1256, %v1299
    %v1305 = vxor.u32 %v1304, 2147483648
    %v1306 = vmul.f32 %v1305, 1.442695
    %v1307 = vpow.pop %v1306
    %v1308 = vadd.f32 %v1307, 1.0
    %v1309 = vrcp.pop %v1308
    %v1310 = vmul.f32 1.0, %v1309
    %v1311 = vtanh.pop %v1304
    %v1312 = vmul.f32 %v1310, %v1249
    %1314 = vrot.lane.b32.xlu0 %v1311, 64
    %v1315 = vpop.permute.xlu0 %1314
    %v1317 = vmul.f32 %v1310, %v1315
    %1319 = vrot.lane.b32.xlu0 %v1317, 32
    %v1320 = vpop.permute.xlu0 %1319
    %v1322 = vadd.f32 %v1312, %v1320
    %v1323 = vtanh.pop %v1322
    %1325 = vrot.lane.b32.xlu0 %v1323, 64
    %v1326 = vpop.permute.xlu0 %1325
    %v1328 = vmul.f32 %v1310, %v1326
    %v1329 = vld [vmem:[%s582] sm:$0xff]
    %v1330 = vpack.c.bf16 %v1328, %v1328
    %1332 = vrot.lane.b32.xlu0 %v1330, 32
    %v1333 = vpop.permute.xlu0 %1332
    %v1335 = vsel %vm268, %v1333, 0
    %1337 = vmatprep.subr.bf16.mxu0 0
    %1338 = vmatpush1.bf16.msra.mxu0 %v1041
    %1339 = vmatprep.subr.bf16.mxu0 0
    %1340 = vmatpush1.bf16.msra.mxu0 %v1042
    %1341 = vmatprep.subr.bf16.mxu0 0
    %1342 = vmatpush1.bf16.msra.mxu0 0
    %1343 = vmatprep.subr.bf16.mxu0 0
    %1344 = vmatpush1.bf16.msra.mxu0 0
    %1345 = vmatprep.subr.bf16.mxu0 0
    %1346 = vmatpush1.bf16.msra.mxu0 0
    %1347 = vmatprep.subr.bf16.mxu0 0
    %1348 = vmatpush1.bf16.msra.mxu0 0
    %1349 = vmatprep.subr.bf16.mxu0 0
    %1350 = vmatpush1.bf16.msra.mxu0 0
    %1351 = vmatprep.subr.bf16.mxu0 0
    %1352 = vmatpush1.bf16.msra.mxu0 0
    %1353 = vmatprep.subr.bf16.mxu0 0
    %1354 = vmatpush1.bf16.msra.mxu0 0
    %1355 = vmatprep.subr.bf16.mxu0 0
    %1356 = vmatpush1.bf16.msra.mxu0 0
    %1357 = vmatprep.subr.bf16.mxu0 0
    %1358 = vmatpush1.bf16.msra.mxu0 0
    %1359 = vmatprep.subr.bf16.mxu0 0
    %1360 = vmatpush1.bf16.msra.mxu0 0
    %1361 = vmatprep.subr.bf16.mxu0 0
    %1362 = vmatpush1.bf16.msra.mxu0 0
    %1363 = vmatprep.subr.bf16.mxu0 0
    %1364 = vmatpush1.bf16.msra.mxu0 0
    %1365 = vmatprep.subr.bf16.mxu0 0
    %1366 = vmatpush1.bf16.msra.mxu0 0
    %1367 = vmatprep.subr.bf16.mxu0 0
    %1368 = vmatpush1.bf16.msra.mxu0 0
    %1369 = vmatprep.mubr.bf16.mxu0 0
    %1370 = vmatmul.mubr.bf16.gmra.mrb[0].mxu0 %v1335
    %v1371 = vpop.f32.mrb[0].mxu0
    %v1372 = vadd.f32 0.0, %v1371
    %v1373 = vpop.f32.mrb[0].mxu0
    %v1374 = vpop.f32.mrb[0].mxu0
    %v1375 = vpop.f32.mrb[0].mxu0
    %1376 = vdwg.mxu0
    %v1377 = vadd.f32 %v1329, %v1372
    %v1378 = vxor.u32 %v1377, 2147483648
    %v1379 = vmul.f32 %v1378, 1.442695
    %v1380 = vpow.pop %v1379
    %v1381 = vadd.f32 %v1380, 1.0
    %v1382 = vrcp.pop %v1381
    %v1383 = vmul.f32 1.0, %v1382
    %v1384 = vtanh.pop %v1377
    %v1385 = vmul.f32 %v1383, %v1322
    %1387 = vrot.lane.b32.xlu0 %v1384, 64
    %v1388 = vpop.permute.xlu0 %1387
    %v1390 = vmul.f32 %v1383, %v1388
    %1392 = vrot.lane.b32.xlu0 %v1390, 32
    %v1393 = vpop.permute.xlu0 %1392
    %v1395 = vadd.f32 %v1385, %v1393
    %v1396 = vtanh.pop %v1395
    %1398 = vrot.lane.b32.xlu0 %v1396, 64
    %v1399 = vpop.permute.xlu0 %1398
    %v1401 = vmul.f32 %v1383, %v1399
    %v1402 = vld [vmem:[%s662] sm:$0xff]
    %v1403 = vpack.c.bf16 %v1401, %v1401
    %1405 = vrot.lane.b32.xlu0 %v1403, 32
    %v1406 = vpop.permute.xlu0 %1405
    %v1408 = vsel %vm268, %v1406, 0
    %1410 = vmatprep.subr.bf16.mxu0 0
    %1411 = vmatpush1.bf16.msra.mxu0 %v1041
    %1412 = vmatprep.subr.bf16.mxu0 0
    %1413 = vmatpush1.bf16.msra.mxu0 %v1042
    %1414 = vmatprep.subr.bf16.mxu0 0
    %1415 = vmatpush1.bf16.msra.mxu0 0
    %1416 = vmatprep.subr.bf16.mxu0 0
    %1417 = vmatpush1.bf16.msra.mxu0 0
    %1418 = vmatprep.subr.bf16.mxu0 0
    %1419 = vmatpush1.bf16.msra.mxu0 0
    %1420 = vmatprep.subr.bf16.mxu0 0
    %1421 = vmatpush1.bf16.msra.mxu0 0
    %1422 = vmatprep.subr.bf16.mxu0 0
    %1423 = vmatpush1.bf16.msra.mxu0 0
    %1424 = vmatprep.subr.bf16.mxu0 0
    %1425 = vmatpush1.bf16.msra.mxu0 0
    %1426 = vmatprep.subr.bf16.mxu0 0
    %1427 = vmatpush1.bf16.msra.mxu0 0
    %1428 = vmatprep.subr.bf16.mxu0 0
    %1429 = vmatpush1.bf16.msra.mxu0 0
    %1430 = vmatprep.subr.bf16.mxu0 0
    %1431 = vmatpush1.bf16.msra.mxu0 0
    %1432 = vmatprep.subr.bf16.mxu0 0
    %1433 = vmatpush1.bf16.msra.mxu0 0
    %1434 = vmatprep.subr.bf16.mxu0 0
    %1435 = vmatpush1.bf16.msra.mxu0 0
    %1436 = vmatprep.subr.bf16.mxu0 0
    %1437 = vmatpush1.bf16.msra.mxu0 0
    %1438 = vmatprep.subr.bf16.mxu0 0
    %1439 = vmatpush1.bf16.msra.mxu0 0
    %1440 = vmatprep.subr.bf16.mxu0 0
    %1441 = vmatpush1.bf16.msra.mxu0 0
    %1442 = vmatprep.mubr.bf16.mxu0 0
    %1443 = vmatmul.mubr.bf16.gmra.mrb[0].mxu0 %v1408
    %v1444 = vpop.f32.mrb[0].mxu0
    %v1445 = vadd.f32 0.0, %v1444
    %v1446 = vpop.f32.mrb[0].mxu0
    %v1447 = vpop.f32.mrb[0].mxu0
    %v1448 = vpop.f32.mrb[0].mxu0
    %1449 = vdwg.mxu0
    %v1450 = vadd.f32 %v1402, %v1445
    %v1451 = vxor.u32 %v1450, 2147483648
    %v1452 = vmul.f32 %v1451, 1.442695
    %v1453 = vpow.pop %v1452
    %v1454 = vadd.f32 %v1453, 1.0
    %v1455 = vrcp.pop %v1454
    %v1456 = vmul.f32 1.0, %v1455
    %v1457 = vtanh.pop %v1450
    %v1458 = vmul.f32 %v1456, %v1395
    %1460 = vrot.lane.b32.xlu0 %v1457, 64
    %v1461 = vpop.permute.xlu0 %1460
    %v1463 = vmul.f32 %v1456, %v1461
    %1465 = vrot.lane.b32.xlu0 %v1463, 32
    %v1466 = vpop.permute.xlu0 %1465
    %v1468 = vadd.f32 %v1458, %v1466
    %v1469 = vtanh.pop %v1468
    %1471 = vrot.lane.b32.xlu0 %v1469, 64
    %v1472 = vpop.permute.xlu0 %1471
    %v1474 = vmul.f32 %v1456, %v1472
    %v1475 = vld [vmem:[%s742] sm:$0xff]
    %v1476 = vpack.c.bf16 %v1474, %v1474
    %1478 = vrot.lane.b32.xlu0 %v1476, 32
    %v1479 = vpop.permute.xlu0 %1478
    %v1481 = vsel %vm268, %v1479, 0
    %1483 = vmatprep.subr.bf16.mxu0 0
    %1484 = vmatpush1.bf16.msra.mxu0 %v1041
    %1485 = vmatprep.subr.bf16.mxu0 0
    %1486 = vmatpush1.bf16.msra.mxu0 %v1042
    %1487 = vmatprep.subr.bf16.mxu0 0
    %1488 = vmatpush1.bf16.msra.mxu0 0
    %1489 = vmatprep.subr.bf16.mxu0 0
    %1490 = vmatpush1.bf16.msra.mxu0 0
    %1491 = vmatprep.subr.bf16.mxu0 0
    %1492 = vmatpush1.bf16.msra.mxu0 0
    %1493 = vmatprep.subr.bf16.mxu0 0
    %1494 = vmatpush1.bf16.msra.mxu0 0
    %1495 = vmatprep.subr.bf16.mxu0 0
    %1496 = vmatpush1.bf16.msra.mxu0 0
    %1497 = vmatprep.subr.bf16.mxu0 0
    %1498 = vmatpush1.bf16.msra.mxu0 0
    %1499 = vmatprep.subr.bf16.mxu0 0
    %1500 = vmatpush1.bf16.msra.mxu0 0
    %1501 = vmatprep.subr.bf16.mxu0 0
    %1502 = vmatpush1.bf16.msra.mxu0 0
    %1503 = vmatprep.subr.bf16.mxu0 0
    %1504 = vmatpush1.bf16.msra.mxu0 0
    %1505 = vmatprep.subr.bf16.mxu0 0
    %1506 = vmatpush1.bf16.msra.mxu0 0
    %1507 = vmatprep.subr.bf16.mxu0 0
    %1508 = vmatpush1.bf16.msra.mxu0 0
    %1509 = vmatprep.subr.bf16.mxu0 0
    %1510 = vmatpush1.bf16.msra.mxu0 0
    %1511 = vmatprep.subr.bf16.mxu0 0
    %1512 = vmatpush1.bf16.msra.mxu0 0
    %1513 = vmatprep.subr.bf16.mxu0 0
    %1514 = vmatpush1.bf16.msra.mxu0 0
    %1515 = vmatprep.mubr.bf16.mxu0 0
    %1516 = vmatmul.mubr.bf16.gmra.mrb[0].mxu0 %v1481
    %v1517 = vpop.f32.mrb[0].mxu0
    %v1518 = vadd.f32 0.0, %v1517
    %v1519 = vpop.f32.mrb[0].mxu0
    %v1520 = vpop.f32.mrb[0].mxu0
    %v1521 = vpop.f32.mrb[0].mxu0
    %1522 = vdwg.mxu0
    %v1523 = vadd.f32 %v1475, %v1518
    %v1524 = vxor.u32 %v1523, 2147483648
    %v1525 = vmul.f32 %v1524, 1.442695
    %v1526 = vpow.pop %v1525
    %v1527 = vadd.f32 %v1526, 1.0
    %v1528 = vrcp.pop %v1527
    %v1529 = vmul.f32 1.0, %v1528
    %v1530 = vtanh.pop %v1523
    %v1531 = vmul.f32 %v1529, %v1468
    %1533 = vrot.lane.b32.xlu0 %v1530, 64
    %v1534 = vpop.permute.xlu0 %1533
    %v1536 = vmul.f32 %v1529, %v1534
    %1538 = vrot.lane.b32.xlu0 %v1536, 32
    %v1539 = vpop.permute.xlu0 %1538
    %v1541 = vadd.f32 %v1531, %v1539
    %v1542 = vtanh.pop %v1541
    %1544 = vrot.lane.b32.xlu0 %v1542, 64
    %v1545 = vpop.permute.xlu0 %1544
    %v1547 = vmul.f32 %v1529, %v1545
    %v1548 = vld [vmem:[%s822] sm:$0xff]
    %v1549 = vpack.c.bf16 %v1547, %v1547
    %1551 = vrot.lane.b32.xlu0 %v1549, 32
    %v1552 = vpop.permute.xlu0 %1551
    %v1554 = vsel %vm268, %v1552, 0
    %1556 = vmatprep.subr.bf16.mxu0 0
    %1557 = vmatpush1.bf16.msra.mxu0 %v1041
    %1558 = vmatprep.subr.bf16.mxu0 0
    %1559 = vmatpush1.bf16.msra.mxu0 %v1042
    %1560 = vmatprep.subr.bf16.mxu0 0
    %1561 = vmatpush1.bf16.msra.mxu0 0
    %1562 = vmatprep.subr.bf16.mxu0 0
    %1563 = vmatpush1.bf16.msra.mxu0 0
    %1564 = vmatprep.subr.bf16.mxu0 0
    %1565 = vmatpush1.bf16.msra.mxu0 0
    %1566 = vmatprep.subr.bf16.mxu0 0
    %1567 = vmatpush1.bf16.msra.mxu0 0
    %1568 = vmatprep.subr.bf16.mxu0 0
    %1569 = vmatpush1.bf16.msra.mxu0 0
    %1570 = vmatprep.subr.bf16.mxu0 0
    %1571 = vmatpush1.bf16.msra.mxu0 0
    %1572 = vmatprep.subr.bf16.mxu0 0
    %1573 = vmatpush1.bf16.msra.mxu0 0
    %1574 = vmatprep.subr.bf16.mxu0 0
    %1575 = vmatpush1.bf16.msra.mxu0 0
    %1576 = vmatprep.subr.bf16.mxu0 0
    %1577 = vmatpush1.bf16.msra.mxu0 0
    %1578 = vmatprep.subr.bf16.mxu0 0
    %1579 = vmatpush1.bf16.msra.mxu0 0
    %1580 = vmatprep.subr.bf16.mxu0 0
    %1581 = vmatpush1.bf16.msra.mxu0 0
    %1582 = vmatprep.subr.bf16.mxu0 0
    %1583 = vmatpush1.bf16.msra.mxu0 0
    %1584 = vmatprep.subr.bf16.mxu0 0
    %1585 = vmatpush1.bf16.msra.mxu0 0
    %1586 = vmatprep.subr.bf16.mxu0 0
    %1587 = vmatpush1.bf16.msra.mxu0 0
    %1588 = vmatprep.mubr.bf16.mxu0 0
    %1589 = vmatmul.mubr.bf16.gmra.mrb[0].mxu0 %v1554
    %v1590 = vpop.f32.mrb[0].mxu0
    %v1591 = vadd.f32 0.0, %v1590
    %v1592 = vpop.f32.mrb[0].mxu0
    %v1593 = vpop.f32.mrb[0].mxu0
    %v1594 = vpop.f32.mrb[0].mxu0
    %1595 = vdwg.mxu0
    %v1596 = vadd.f32 %v1548, %v1591
    %v1597 = vxor.u32 %v1596, 2147483648
    %v1598 = vmul.f32 %v1597, 1.442695
    %v1599 = vpow.pop %v1598
    %v1600 = vadd.f32 %v1599, 1.0
    %v1601 = vrcp.pop %v1600
    %v1602 = vmul.f32 1.0, %v1601
    %v1603 = vtanh.pop %v1596
    %v1604 = vmul.f32 %v1602, %v1541
    %1606 = vrot.lane.b32.xlu0 %v1603, 64
    %v1607 = vpop.permute.xlu0 %1606
    %v1609 = vmul.f32 %v1602, %v1607
    %1611 = vrot.lane.b32.xlu0 %v1609, 32
    %v1612 = vpop.permute.xlu0 %1611
    %v1614 = vadd.f32 %v1604, %v1612
    %v1615 = vtanh.pop %v1614
    %1617 = vrot.lane.b32.xlu0 %v1615, 64
    %v1618 = vpop.permute.xlu0 %1617
    %v1620 = vmul.f32 %v1602, %v1618
    %1622 = vrot.lane.b32.xlu0 %v1620, 32
    %v1623 = vpop.permute.xlu0 %1622
    %s1625 = scalar_lea.vmem [#allocation16], 8
    %1626 = vst.msk [vmem:[%s1625] sm:$0xff] %vm268, %v1623
    %1628 = vrot.lane.b32.xlu0 %v1614, 96
    %v1629 = vpop.permute.xlu0 %1628
    %s1631 = scalar_lea.vmem [#allocation17], 8
    %1632 = vst.msk [vmem:[%s1631] sm:$0xff] %vm268, %v1629
    // Predicated region
    $region58: #{tpu_custom_call.1} parent=1 // pred_check
      _
    $region59: #{tpu_custom_call.1} parent=1 // pred_check_branch
      %1634 = sbr.rel (0) target = $region61
    $region60: #{tpu_custom_call.1} parent=1 // pred_region
      %s1636 = ssub.s32 256, 256
      %1637 = vsyncadd [#allocation6], %s1636
      %s1638 = sshll.u32 [#allocation16], 4
      %s1639 = int_to_ptr.vmem [resolvable:$true] %s1638
      %1644 = dma.vmem_to_hbm [thread:$0]  %s1639, 256, %s7, [#allocation6], 128, 128, 8
    $region61: #{tpu_custom_call.1} parent=1 // pred_fallthru
      _
    // Predicated region
    $region62: #{tpu_custom_call.1} parent=1 // pred_check
      _
    $region63: #{tpu_custom_call.1} parent=1 // pred_check_branch
      %1646 = sbr.rel (0) target = $region65
    $region64: #{tpu_custom_call.1} parent=1 // pred_region
      %s1648 = ssub.s32 256, 256
      %1649 = vsyncadd [#allocation18], %s1648
      %s1650 = sshll.u32 [#allocation17], 4
      %s1651 = int_to_ptr.vmem [resolvable:$true] %s1650
      %1656 = dma.vmem_to_hbm [thread:$0]  %s1651, 256, %s8, [#allocation18], 128, 128, 8
    $region65: #{tpu_custom_call.1} parent=1 // pred_fallthru
      _
    // Predicated region
    $region66: #{tpu_custom_call.1} parent=1 // pred_check
      _
    $region67: #{tpu_custom_call.1} parent=1 // pred_check_branch
      %1658 = sbr.rel (0) target = $region69
    $region68: #{tpu_custom_call.1} parent=1 // pred_region
      %1659 = dma.done [#allocation6], 256
    $region69: #{tpu_custom_call.1} parent=1 // pred_fallthru
      _
    // Predicated region
    $region70: #{tpu_custom_call.1} parent=1 // pred_check
      _
    $region71: #{tpu_custom_call.1} parent=1 // pred_check_branch
      %1661 = sbr.rel (0) target = $region73
    $region72: #{tpu_custom_call.1} parent=1 // pred_region
      %1662 = dma.done [#allocation18], 256
    $region73: #{tpu_custom_call.1} parent=1 // pred_fallthru
      _
    %1663 = vsyncpa [#allocation5], 1
    %1664 = vsyncpa [#allocation8], 1
    %1665 = vsyncpa [#allocation11], 1
    %1666 = vsyncpa [#allocation14], 1
    %1667 = vsyncpa [#allocation6], 1
    %1668 = vsyncpa [#allocation18], 1

</llo_original>
